<compile_context>
chip_gen: v7x
topology: tpu7x:2x2x1
jax: 0.10.0
libtpu: 0.0.40
codegen_flags: <defaults>
</compile_context>

<pallas_src>
import jax
import jax.numpy as jnp
import numpy as np
from jax.experimental import pallas as pl
from jax.experimental.pallas import tpu as pltpu


_HIDDEN = 128  # fixed by the module: nn.Linear(input_dim, 128)


def _round_up(x, m):
    return ((x + m - 1) // m) * m


def _vb_mi_kernel(x_ref, w1_ref, b1_ref, w2_ref, b2_ref, o_ref):
    """One batch tile of q_net: Linear(D,128) -> ReLU -> Linear(128, D)."""
    x = x_ref[...]                                                     # (TB, D)
    h = jnp.dot(x, w1_ref[...], preferred_element_type=jnp.float32) + b1_ref[...]
    h = jnp.maximum(h, 0.0)                                            # (TB, 128) f32
    o_ref[...] = (jnp.dot(h.astype(w2_ref.dtype), w2_ref[...],
                          preferred_element_type=jnp.float32)
                  + b2_ref[...]).astype(o_ref.dtype)                   # (TB, D)


def variational_bound_mi_fwd(x, y, params, *, batch_tile=2048, stream_bf16=False):
    """Pallas forward of VariationalBoundMI: returns q_net(x); `y` is unused
    (matches the PyTorch module's forward signature/semantics).

    stream_bf16=True halves HBM traffic on this bandwidth-bound kernel but
    changes numerics vs. the f32 module (accumulation stays f32)."""
    del y  # module ignores y
    B, D_in = x.shape

    w1 = jnp.asarray(params["w1"], jnp.float32)
    w2 = jnp.asarray(params["w2"], jnp.float32)
    assert w1.shape == (D_in, _HIDDEN), w1.shape
    assert w2.shape == (_HIDDEN, D_in), w2.shape
    # tolerate 1-D biases (nn.Linear stores them 1-D)
    b1 = jnp.asarray(params["b1"], jnp.float32).reshape(1, _HIDDEN)
    b2 = jnp.asarray(params["b2"], jnp.float32).reshape(1, D_in)

    stream_dtype = jnp.bfloat16 if stream_bf16 else jnp.float32
    bpe = 2 if stream_bf16 else 4
    x_s = x.astype(stream_dtype)
    w1_s = w1.astype(stream_dtype)
    w2_s = w2.astype(stream_dtype)

    # ---------------- tile selection (device-derived VMEM budget) -------------
    vmem_cap = 64 << 20  # conservative fallback (v7x per-TC capacity)
    try:
        vmem_cap = int(pltpu.get_tpu_info().vmem_capacity_bytes)
    except Exception:
        pass
    budget = int(0.45 * vmem_cap)   # leave headroom for Mosaic internal scratch

    align = 256  # MXU row multiple on v6e/v7x (fine on v5e too; mem-bound anyway)
    tb = max(int(batch_tile), 8)
    if B > align:
        # keep the grid >= 2 steps so both v7x TensorCores get a batch tile
        tb = min(tb, _round_up(pl.cdiv(B, 2), align))
    else:
        tb = min(tb, _round_up(B, 8))
    tb = _round_up(tb, 8)

    def footprint(t, weight_bufs):
        stream = 2 * 2 * t * D_in * bpe                              # x + out, double-buffered
        weights = weight_bufs * ((2 * D_in * _HIDDEN) * bpe + (_HIDDEN + D_in) * 4)
        return stream + weights

    # shrink (conservatively assuming double-buffered weights) until it fits
    while tb > align and footprint(tb, 2) > budget:
        tb = max(align, _round_up(tb // 2, align))
    while tb > 8 and footprint(tb, 2) > budget:
        tb = max(8, _round_up(tb // 2, 8))

    grid = (pl.cdiv(B, tb),)   # boundary tile handled by Pallas masking (no jnp.pad)

    flops = 2 * B * (D_in * _HIDDEN + _HIDDEN * D_in)
    bytes_accessed = (2 * B * D_in * bpe                 # streamed x + out
                      + 2 * D_in * _HIDDEN * bpe         # w1 + w2 (once)
                      + (_HIDDEN + D_in) * 4)            # biases
    cost = pl.CostEstimate(flops=int(flops), transcendentals=0,
                           bytes_accessed=int(bytes_accessed))

    vmem_limit = int(min(vmem_cap * 3 // 4, max(2 * footprint(tb, 2), 32 << 20)))

    def _call(single_buffer_weights):
        def wspec(shape):
            if single_buffer_weights:
                # constant-index blocks only need one resident buffer
                return pl.BlockSpec(shape, lambda i: (0, 0),
                                    pipeline_mode=pl.Buffered(1))
            return pl.BlockSpec(shape, lambda i: (0, 0))

        grid_spec = pltpu.PrefetchScalarGridSpec(
            num_scalar_prefetch=0,
            grid=grid,
            in_specs=[
                pl.BlockSpec((tb, D_in), lambda i: (i, 0)),     # x  (streamed)
                wspec((D_in, _HIDDEN)),                         # w1 (resident)
                wspec((1, _HIDDEN)),                            # b1
                wspec((_HIDDEN, D_in)),                         # w2
                wspec((1, D_in)),                               # b2
            ],
            out_specs=pl.BlockSpec((tb, D_in), lambda i: (i, 0)),
        )
        return pl.pallas_call(
            _vb_mi_kernel,
            grid_spec=grid_spec,
            out_shape=jax.ShapeDtypeStruct((B, D_in), stream_dtype),
            compiler_params=pltpu.CompilerParams(
                dimension_semantics=("parallel",),
                vmem_limit_bytes=vmem_limit),
            cost_estimate=cost,
        )(x_s, w1_s, b1, w2_s, b2)

    try:
        out = _call(True)
    except Exception:
        # pipeline_mode=pl.Buffered(1) not supported on this jax/libtpu combo;
        # fall back to default (double-buffered) weight blocks.
        out = _call(False)
    return out


def build_params(key, input_dim):
    """nn.Linear weights stored pre-transposed as (in, out); biases as (1, out)."""
    k1, k2, k3, k4 = jax.random.split(key, 4)
    w1 = jax.random.normal(k1, (input_dim, _HIDDEN), jnp.float32) * 0.05
    b1 = jax.random.normal(k2, (1, _HIDDEN), jnp.float32) * 0.05
    w2 = jax.random.normal(k3, (_HIDDEN, input_dim), jnp.float32) * 0.05
    b2 = jax.random.normal(k4, (1, input_dim), jnp.float32) * 0.05
    return dict(w1=w1, b1=b1, w2=w2, b2=b2)


def reference_forward(x, params):
    """Pure-JAX reference mirroring the PyTorch q_net exactly."""
    h = jnp.maximum(x @ params["w1"] + params["b1"].reshape(1, -1), 0.0)
    return h @ params["w2"] + params["b2"].reshape(1, -1)


if __name__ == "__main__":
    # Small shapes consistent with the module; batch deliberately NOT a multiple
    # of the tile so the cdiv grid + boundary-masked last tile is exercised.
    B = 300
    input_dim = 32

    key = jax.random.PRNGKey(0)
    kx, ky, kp = jax.random.split(key, 3)
    x = jax.random.normal(kx, (B, input_dim), jnp.float32)
    y = jax.random.normal(ky, (B, input_dim), jnp.float32)   # ignored, as in the module
    params = build_params(kp, input_dim)

    out = variational_bound_mi_fwd(x, y, params)
    jax.block_until_ready(out)

    ref = reference_forward(x, params)
    np.testing.assert_allclose(np.asarray(out), np.asarray(ref),
                               rtol=1e-5, atol=1e-5)
    print("KERNEL_OK")
</pallas_src>

<mosaic_0001>
module attributes {stable_mosaic.version = 11 : i64} {
  func.func @_vb_mi_kernel(%arg0: i32, %arg1: memref<256x32xf32, #tpu.memory_space<vmem>>, %arg2: memref<32x128xf32, #tpu.memory_space<vmem>>, %arg3: memref<1x128xf32, #tpu.memory_space<vmem>>, %arg4: memref<128x32xf32, #tpu.memory_space<vmem>>, %arg5: memref<1x32xf32, #tpu.memory_space<vmem>>, %arg6: memref<256x32xf32, #tpu.memory_space<vmem>>) attributes {dimension_semantics = [#tpu.dimension_semantics<parallel>], iteration_bounds = array<i64: 2>, scalar_prefetch = 0 : i64, scratch_operands = 0 : i64, tpu.core_type = #tpu.core_type<tc>, window_params = [{transform_indices = @transform_0, window_bounds = array<i64: 256, 32>}, {pipeline_mode = #tpu.pipeline_mode<synchronous>, transform_indices = @transform_1, window_bounds = array<i64: 32, 128>}, {pipeline_mode = #tpu.pipeline_mode<synchronous>, transform_indices = @transform_2, window_bounds = array<i64: 1, 128>}, {pipeline_mode = #tpu.pipeline_mode<synchronous>, transform_indices = @transform_3, window_bounds = array<i64: 128, 32>}, {pipeline_mode = #tpu.pipeline_mode<synchronous>, transform_indices = @transform_4, window_bounds = array<i64: 1, 32>}, {transform_indices = @transform_5, window_bounds = array<i64: 256, 32>}]} {
    %c0 = arith.constant 0 : index
    %c0_0 = arith.constant 0 : index
    %0 = vector.load %arg1[%c0, %c0_0] : memref<256x32xf32, #tpu.memory_space<vmem>>, vector<256x32xf32>
    %c0_1 = arith.constant 0 : index
    %c0_2 = arith.constant 0 : index
    %1 = vector.load %arg2[%c0_1, %c0_2] : memref<32x128xf32, #tpu.memory_space<vmem>>, vector<32x128xf32>
    %cst = arith.constant dense<0.000000e+00> : vector<256x128xf32>
    %2 = tpu.matmul %0, %1, %cst {dimension_numbers = #tpu.dot_dimension_numbers<[1], [0], [0], [1], [0, 0, 1, 1], [], []>} : vector<256x32xf32>, vector<32x128xf32>, vector<256x128xf32> -> vector<256x128xf32>
    %c0_3 = arith.constant 0 : index
    %c0_4 = arith.constant 0 : index
    %3 = vector.load %arg3[%c0_3, %c0_4] : memref<1x128xf32, #tpu.memory_space<vmem>>, vector<1x128xf32>
    %4 = vector.broadcast %3 : vector<1x128xf32> to vector<256x128xf32>
    %5 = arith.addf %2, %4 : vector<256x128xf32>
    %cst_5 = arith.constant 0.000000e+00 : f32
    %6 = vector.broadcast %cst_5 : f32 to vector<256x128xf32>
    %7 = arith.maximumf %5, %6 : vector<256x128xf32>
    %c0_6 = arith.constant 0 : index
    %c0_7 = arith.constant 0 : index
    %8 = vector.load %arg4[%c0_6, %c0_7] : memref<128x32xf32, #tpu.memory_space<vmem>>, vector<128x32xf32>
    %cst_8 = arith.constant dense<0.000000e+00> : vector<256x32xf32>
    %9 = tpu.matmul %7, %8, %cst_8 {dimension_numbers = #tpu.dot_dimension_numbers<[1], [0], [0], [1], [0, 0, 1, 1], [], []>} : vector<256x128xf32>, vector<128x32xf32>, vector<256x32xf32> -> vector<256x32xf32>
    %c0_9 = arith.constant 0 : index
    %c0_10 = arith.constant 0 : index
    %10 = vector.load %arg5[%c0_9, %c0_10] : memref<1x32xf32, #tpu.memory_space<vmem>>, vector<1x32xf32>
    %11 = vector.broadcast %10 : vector<1x32xf32> to vector<256x32xf32>
    %12 = arith.addf %9, %11 : vector<256x32xf32>
    %c0_11 = arith.constant 0 : index
    %c0_12 = arith.constant 0 : index
    %13 = vector.load %arg6[%c0_11, %c0_12] : memref<256x32xf32, #tpu.memory_space<vmem>>, vector<256x32xf32>
    tpu.vector_store %arg6[%c0_11, %c0_12], %12 {strides = array<i32>} : memref<256x32xf32, #tpu.memory_space<vmem>>, vector<256x32xf32>,
    return
  }
  func.func @transform_0(%arg0: i32) -> (i32, i32) {
    %c0_i32 = arith.constant 0 : i32
    %c0_i32_0 = arith.constant 0 : i32
    return %arg0, %c0_i32 : i32, i32
  }
  func.func @transform_1(%arg0: i32) -> (i32, i32) {
    %c0_i32 = arith.constant 0 : i32
    %c0_i32_0 = arith.constant 0 : i32
    %c0_i32_1 = arith.constant 0 : i32
    return %c0_i32, %c0_i32_0 : i32, i32
  }
  func.func @transform_2(%arg0: i32) -> (i32, i32) {
    %c0_i32 = arith.constant 0 : i32
    %c0_i32_0 = arith.constant 0 : i32
    %c0_i32_1 = arith.constant 0 : i32
    return %c0_i32, %c0_i32_0 : i32, i32
  }
  func.func @transform_3(%arg0: i32) -> (i32, i32) {
    %c0_i32 = arith.constant 0 : i32
    %c0_i32_0 = arith.constant 0 : i32
    %c0_i32_1 = arith.constant 0 : i32
    return %c0_i32, %c0_i32_0 : i32, i32
  }
  func.func @transform_4(%arg0: i32) -> (i32, i32) {
    %c0_i32 = arith.constant 0 : i32
    %c0_i32_0 = arith.constant 0 : i32
    %c0_i32_1 = arith.constant 0 : i32
    return %c0_i32, %c0_i32_0 : i32, i32
  }
  func.func @transform_5(%arg0: i32) -> (i32, i32) {
    %c0_i32 = arith.constant 0 : i32
    %c0_i32_0 = arith.constant 0 : i32
    return %arg0, %c0_i32 : i32, i32
  }
}

module attributes {stable_mosaic.version = 11 : i64} {
  func.func @_vb_mi_kernel(%arg0: i32, %arg1: memref<256x32xf32, #tpu.memory_space<vmem>>, %arg2: memref<32x128xf32, #tpu.memory_space<vmem>>, %arg3: memref<1x128xf32, #tpu.memory_space<vmem>>, %arg4: memref<128x32xf32, #tpu.memory_space<vmem>>, %arg5: memref<1x32xf32, #tpu.memory_space<vmem>>, %arg6: memref<256x32xf32, #tpu.memory_space<vmem>>) attributes {dimension_semantics = [#tpu.dimension_semantics<parallel>], iteration_bounds = array<i64: 2>, scalar_prefetch = 0 : i64, scratch_operands = 0 : i64, tpu.core_type = #tpu.core_type<tc>, window_params = [{transform_indices = @transform_0, window_bounds = array<i64: 256, 32>}, {pipeline_mode = #tpu.pipeline_mode<synchronous>, transform_indices = @transform_1, window_bounds = array<i64: 32, 128>}, {pipeline_mode = #tpu.pipeline_mode<synchronous>, transform_indices = @transform_2, window_bounds = array<i64: 1, 128>}, {pipeline_mode = #tpu.pipeline_mode<synchronous>, transform_indices = @transform_3, window_bounds = array<i64: 128, 32>}, {pipeline_mode = #tpu.pipeline_mode<synchronous>, transform_indices = @transform_4, window_bounds = array<i64: 1, 32>}, {transform_indices = @transform_5, window_bounds = array<i64: 256, 32>}]} {
    %c0 = arith.constant 0 : index
    %c0_0 = arith.constant 0 : index
    %0 = vector.load %arg1[%c0, %c0_0] : memref<256x32xf32, #tpu.memory_space<vmem>>, vector<256x32xf32>
    %c0_1 = arith.constant 0 : index
    %c0_2 = arith.constant 0 : index
    %1 = vector.load %arg2[%c0_1, %c0_2] : memref<32x128xf32, #tpu.memory_space<vmem>>, vector<32x128xf32>
    %cst = arith.constant dense<0.000000e+00> : vector<256x128xf32>
    %2 = tpu.matmul %0, %1, %cst {dimension_numbers = #tpu.dot_dimension_numbers<[1], [0], [0], [1], [0, 0, 1, 1], [], []>} : vector<256x32xf32>, vector<32x128xf32>, vector<256x128xf32> -> vector<256x128xf32>
    %c0_3 = arith.constant 0 : index
    %c0_4 = arith.constant 0 : index
    %3 = vector.load %arg3[%c0_3, %c0_4] : memref<1x128xf32, #tpu.memory_space<vmem>>, vector<1x128xf32>
    %4 = vector.broadcast %3 : vector<1x128xf32> to vector<256x128xf32>
    %5 = arith.addf %2, %4 : vector<256x128xf32>
    %cst_5 = arith.constant 0.000000e+00 : f32
    %6 = vector.broadcast %cst_5 : f32 to vector<256x128xf32>
    %7 = arith.maximumf %5, %6 : vector<256x128xf32>
    %c0_6 = arith.constant 0 : index
    %c0_7 = arith.constant 0 : index
    %8 = vector.load %arg4[%c0_6, %c0_7] : memref<128x32xf32, #tpu.memory_space<vmem>>, vector<128x32xf32>
    %cst_8 = arith.constant dense<0.000000e+00> : vector<256x32xf32>
    %9 = tpu.matmul %7, %8, %cst_8 {dimension_numbers = #tpu.dot_dimension_numbers<[1], [0], [0], [1], [0, 0, 1, 1], [], []>} : vector<256x128xf32>, vector<128x32xf32>, vector<256x32xf32> -> vector<256x32xf32>
    %c0_9 = arith.constant 0 : index
    %c0_10 = arith.constant 0 : index
    %10 = vector.load %arg5[%c0_9, %c0_10] : memref<1x32xf32, #tpu.memory_space<vmem>>, vector<1x32xf32>
    %11 = vector.broadcast %10 : vector<1x32xf32> to vector<256x32xf32>
    %12 = arith.addf %9, %11 : vector<256x32xf32>
    %c0_11 = arith.constant 0 : index
    %c0_12 = arith.constant 0 : index
    %13 = vector.load %arg6[%c0_11, %c0_12] : memref<256x32xf32, #tpu.memory_space<vmem>>, vector<256x32xf32>
    tpu.vector_store %arg6[%c0_11, %c0_12], %12 {strides = array<i32>} : memref<256x32xf32, #tpu.memory_space<vmem>>, vector<256x32xf32>,
    return
  }
  func.func @transform_0(%arg0: i32) -> (i32, i32) {
    %c0_i32 = arith.constant 0 : i32
    %c0_i32_0 = arith.constant 0 : i32
    return %arg0, %c0_i32 : i32, i32
  }
  func.func @transform_1(%arg0: i32) -> (i32, i32) {
    %c0_i32 = arith.constant 0 : i32
    %c0_i32_0 = arith.constant 0 : i32
    %c0_i32_1 = arith.constant 0 : i32
    return %c0_i32, %c0_i32_0 : i32, i32
  }
  func.func @transform_2(%arg0: i32) -> (i32, i32) {
    %c0_i32 = arith.constant 0 : i32
    %c0_i32_0 = arith.constant 0 : i32
    %c0_i32_1 = arith.constant 0 : i32
    return %c0_i32, %c0_i32_0 : i32, i32
  }
  func.func @transform_3(%arg0: i32) -> (i32, i32) {
    %c0_i32 = arith.constant 0 : i32
    %c0_i32_0 = arith.constant 0 : i32
    %c0_i32_1 = arith.constant 0 : i32
    return %c0_i32, %c0_i32_0 : i32, i32
  }
  func.func @transform_4(%arg0: i32) -> (i32, i32) {
    %c0_i32 = arith.constant 0 : i32
    %c0_i32_0 = arith.constant 0 : i32
    %c0_i32_1 = arith.constant 0 : i32
    return %c0_i32, %c0_i32_0 : i32, i32
  }
  func.func @transform_5(%arg0: i32) -> (i32, i32) {
    %c0_i32 = arith.constant 0 : i32
    %c0_i32_0 = arith.constant 0 : i32
    return %arg0, %c0_i32 : i32, i32
  }
}

</mosaic_0001>

<llo_original>
// kernel: tpu_custom_call.1
$region0: #{tpu_custom_call.1}
  #allocation0 [shape = 'u32[]', space=smem, size = 0x4, offset = 0x4, fixed_abs, tag = 'smem constant byte address 0x4 - core index']
  #allocation1 [shape = 'u32[144,128]{1,0:T(1,128)}', space=vmem, size = 0x12000, scoped, tag = 'internal scratch']
  %s0 = inlined_call_operand.vmem [shape: f32[300,32], index: 0, kind: input, shape index: {}]
  %s1 = inlined_call_operand.vmem [shape: f32[32,128], index: 1, kind: input, shape index: {}]
  %s2 = inlined_call_operand.vmem [shape: f32[1,128], index: 2, kind: input, shape index: {}]
  %s3 = inlined_call_operand.vmem [shape: f32[128,32], index: 3, kind: input, shape index: {}]
  %s4 = inlined_call_operand.vmem [shape: f32[1,32], index: 4, kind: input, shape index: {}]
  %s5 = inlined_call_operand.vmem [shape: f32[300,32], index: 5, kind: output, shape index: {}]
  %s6 = sld [smem:[#allocation0]]
  $region101: #{tpu_custom_call.1} parent=0
    _
  %s8 = ssub.s32 1, %s6
  %s9 = scalar_select 0, %s8, %s6
  $region1: #{tpu_custom_call.1} parent=0
    #allocation2 [shape = 'u8[262144]{0}', space=vmem, size = 0x40000, scoped, tag = 'output window, operand 0']
    loop: start=0, step=1, limit=4
    $region2: #{tpu_custom_call.1} parent=1 // loop_pre_header
      _
    $region3: #{tpu_custom_call.1} parent=1 // loop_header
      %s11 = sphi 0, %s15
      %p12 = scmp.ge.s32.totalorder %s11, 4
      %s21 = sphi 0, %s23
      %s24 = sphi 0, %s21
      %s25 = sphi 0, %s24
      %s41 = sphi 0, %s25
      %s45 = sphi 0, %s45
      %s47 = sphi 0, %s45
      %s48 = sphi 0, %s47
      %s62 = sphi 0, %s48
      %s66 = sphi 0, %s66
      %s68 = sphi 0, %s66
      %s69 = sphi 0, %s68
      %s83 = sphi 0, %s69
      %s87 = sphi 0, %s87
      %s89 = sphi 0, %s87
      %s90 = sphi 0, %s89
      %s104 = sphi 0, %s90
      %s108 = sphi 0, %s108
      %s110 = sphi 0, %s108
      %s111 = sphi 0, %s110
      %s125 = sphi 0, %s111
      %s131 = sphi 0, %s133
      %s134 = sphi 0, %s131
      %s135 = sphi 0, %s134
      %s151 = sphi 0, %s135
    $region4: #{tpu_custom_call.1} parent=1 // loop_header_branch
      %14 = sbr.rel (%p12) target = $region8
    $region5: #{tpu_custom_call.1} parent=1 // loop_body
      %s16 = ssub.s32 %s11, 1
      %s17 = ssub.s32 %s11, 2
      %s18 = sadd.s32 %s11, 1
      %s19 = ssub.s32 %s11, %s18
      %p20 = scmp.eq.s32.totalorder %s19, 0
      %s22 = sadd.s32 %s21, 1
      %s23 = scalar_select %p20, %s21, %s22
      %p26 = pneg %p20
      %p27 = scmp.eq.s32.totalorder %s11, 1
      %p28 = por %p26, %p27
      %p29 = scmp.ne.s32.totalorder %s21, %s24
      %p30 = scmp.eq.s32.totalorder %s11, 0
      %p31 = por %p29, %p30
      %p32 = scmp.ne.s32.totalorder %s21, %s24
      %p33 = scmp.eq.s32.totalorder %s16, 1
      %p34 = por %p32, %p33
      %p35 = scmp.ne.s32.totalorder %s24, %s25
      %p36 = scmp.eq.s32.totalorder %s16, 0
      %p37 = por %p35, %p36
      %p38 = scmp.ne.s32.totalorder %s24, %s25
      %p39 = scmp.eq.s32.totalorder %s17, 1
      %p40 = por %p38, %p39
      %p42 = scmp.ne.s32.totalorder %s25, %s41
      %p43 = scmp.eq.s32.totalorder %s17, 0
      %p44 = por %p42, %p43
      %s46 = sadd.s32 %s45, 1
      %p49 = scmp.eq.s32.totalorder %s11, 1
      %p50 = scmp.ne.s32.totalorder %s45, %s47
      %p51 = scmp.eq.s32.totalorder %s11, 0
      %p52 = por %p50, %p51
      %p53 = scmp.ne.s32.totalorder %s45, %s47
      %p54 = scmp.eq.s32.totalorder %s16, 1
      %p55 = por %p53, %p54
      %p56 = scmp.ne.s32.totalorder %s47, %s48
      %p57 = scmp.eq.s32.totalorder %s16, 0
      %p58 = por %p56, %p57
      %p59 = scmp.ne.s32.totalorder %s47, %s48
      %p60 = scmp.eq.s32.totalorder %s17, 1
      %p61 = por %p59, %p60
      %p63 = scmp.ne.s32.totalorder %s48, %s62
      %p64 = scmp.eq.s32.totalorder %s17, 0
      %p65 = por %p63, %p64
      %s67 = sadd.s32 %s66, 1
      %p70 = scmp.eq.s32.totalorder %s11, 1
      %p71 = scmp.ne.s32.totalorder %s66, %s68
      %p72 = scmp.eq.s32.totalorder %s11, 0
      %p73 = por %p71, %p72
      %p74 = scmp.ne.s32.totalorder %s66, %s68
      %p75 = scmp.eq.s32.totalorder %s16, 1
      %p76 = por %p74, %p75
      %p77 = scmp.ne.s32.totalorder %s68, %s69
      %p78 = scmp.eq.s32.totalorder %s16, 0
      %p79 = por %p77, %p78
      %p80 = scmp.ne.s32.totalorder %s68, %s69
      %p81 = scmp.eq.s32.totalorder %s17, 1
      %p82 = por %p80, %p81
      %p84 = scmp.ne.s32.totalorder %s69, %s83
      %p85 = scmp.eq.s32.totalorder %s17, 0
      %p86 = por %p84, %p85
      %s88 = sadd.s32 %s87, 1
      %p91 = scmp.eq.s32.totalorder %s11, 1
      %p92 = scmp.ne.s32.totalorder %s87, %s89
      %p93 = scmp.eq.s32.totalorder %s11, 0
      %p94 = por %p92, %p93
      %p95 = scmp.ne.s32.totalorder %s87, %s89
      %p96 = scmp.eq.s32.totalorder %s16, 1
      %p97 = por %p95, %p96
      %p98 = scmp.ne.s32.totalorder %s89, %s90
      %p99 = scmp.eq.s32.totalorder %s16, 0
      %p100 = por %p98, %p99
      %p101 = scmp.ne.s32.totalorder %s89, %s90
      %p102 = scmp.eq.s32.totalorder %s17, 1
      %p103 = por %p101, %p102
      %p105 = scmp.ne.s32.totalorder %s90, %s104
      %p106 = scmp.eq.s32.totalorder %s17, 0
      %p107 = por %p105, %p106
      %s109 = sadd.s32 %s108, 1
      %p112 = scmp.eq.s32.totalorder %s11, 1
      %p113 = scmp.ne.s32.totalorder %s108, %s110
      %p114 = scmp.eq.s32.totalorder %s11, 0
      %p115 = por %p113, %p114
      %p116 = scmp.ne.s32.totalorder %s108, %s110
      %p117 = scmp.eq.s32.totalorder %s16, 1
      %p118 = por %p116, %p117
      %p119 = scmp.ne.s32.totalorder %s110, %s111
      %p120 = scmp.eq.s32.totalorder %s16, 0
      %p121 = por %p119, %p120
      %p122 = scmp.ne.s32.totalorder %s110, %s111
      %p123 = scmp.eq.s32.totalorder %s17, 1
      %p124 = por %p122, %p123
      %p126 = scmp.ne.s32.totalorder %s111, %s125
      %p127 = scmp.eq.s32.totalorder %s17, 0
      %p128 = por %p126, %p127
      %s129 = ssub.s32 %s11, %s18
      %p130 = scmp.eq.s32.totalorder %s129, 0
      %s132 = sadd.s32 %s131, 1
      %s133 = scalar_select %p130, %s131, %s132
      %p136 = pneg %p130
      %p137 = scmp.eq.s32.totalorder %s11, 1
      %p138 = por %p136, %p137
      %p139 = scmp.ne.s32.totalorder %s131, %s134
      %p140 = scmp.eq.s32.totalorder %s11, 0
      %p141 = por %p139, %p140
      %p142 = scmp.ne.s32.totalorder %s131, %s134
      %p143 = scmp.eq.s32.totalorder %s16, 1
      %p144 = por %p142, %p143
      %p145 = scmp.ne.s32.totalorder %s134, %s135
      %p146 = scmp.eq.s32.totalorder %s16, 0
      %p147 = por %p145, %p146
      %p148 = scmp.ne.s32.totalorder %s134, %s135
      %p149 = scmp.eq.s32.totalorder %s17, 1
      %p150 = por %p148, %p149
      %p152 = scmp.ne.s32.totalorder %s135, %s151
      %p153 = scmp.eq.s32.totalorder %s17, 0
      %p154 = por %p152, %p153
      %p155 = scmp.le.s32.totalorder 1, %s11
      %p156 = scmp.lt.s32.totalorder %s11, 3
      %p157 = pnand %p155, %p156
      %p158 = pneg %p157
      // Predicated region
      $region9: #{tpu_custom_call.1} parent=5 // pred_check
        _
      $region10: #{tpu_custom_call.1} parent=5 // pred_check_branch
        %160 = sbr.rel (%p157) target = $region12
      $region11: #{tpu_custom_call.1} parent=5 // pred_region
        %s161 = ssub.s32 %s11, 1
        // Predicated region
        $region13: #{tpu_custom_call.1} parent=11 // pred_check
          %p162 = pneg %p58
        $region14: #{tpu_custom_call.1} parent=11 // pred_check_branch
          %164 = sbr.rel (%p162) target = $region16
        $region15: #{tpu_custom_call.1} parent=11 // pred_region
          _
        $region16: #{tpu_custom_call.1} parent=11 // pred_fallthru
          _
        // Predicated region
        $region17: #{tpu_custom_call.1} parent=11 // pred_check
          %p165 = pneg %p79
        $region18: #{tpu_custom_call.1} parent=11 // pred_check_branch
          %167 = sbr.rel (%p165) target = $region20
        $region19: #{tpu_custom_call.1} parent=11 // pred_region
          _
        $region20: #{tpu_custom_call.1} parent=11 // pred_fallthru
          _
        // Predicated region
        $region21: #{tpu_custom_call.1} parent=11 // pred_check
          %p168 = pneg %p100
        $region22: #{tpu_custom_call.1} parent=11 // pred_check_branch
          %170 = sbr.rel (%p168) target = $region24
        $region23: #{tpu_custom_call.1} parent=11 // pred_region
          _
        $region24: #{tpu_custom_call.1} parent=11 // pred_fallthru
          _
        // Predicated region
        $region25: #{tpu_custom_call.1} parent=11 // pred_check
          %p171 = pneg %p121
        $region26: #{tpu_custom_call.1} parent=11 // pred_check_branch
          %173 = sbr.rel (%p171) target = $region28
        $region27: #{tpu_custom_call.1} parent=11 // pred_region
          _
        $region28: #{tpu_custom_call.1} parent=11 // pred_fallthru
          _
      $region12: #{tpu_custom_call.1} parent=5 // pred_fallthru
        _
      %p174 = scmp.lt.s32.totalorder %s11, 2
      // Predicated region
      $region29: #{tpu_custom_call.1} parent=5 // pred_check
        %p175 = pneg %p174
      $region30: #{tpu_custom_call.1} parent=5 // pred_check_branch
        %177 = sbr.rel (%p175) target = $region32
      $region31: #{tpu_custom_call.1} parent=5 // pred_region
        // Predicated region
        $region33: #{tpu_custom_call.1} parent=31 // pred_check
          %p178 = pneg %p31
        $region34: #{tpu_custom_call.1} parent=31 // pred_check_branch
          %180 = sbr.rel (%p178) target = $region36
        $region35: #{tpu_custom_call.1} parent=31 // pred_region
          %s181 = smul.u32 32, %s11
          %s182 = ssub.s32 38, %s181
          %p183 = scmp.lt.s32.totalorder %s182, 32
          %s184 = scalar_select %p183, %s182, 32
          %s185 = smul.u32 128, %s184
          %p186 = scmp.lt.s32.totalorder %s181, 37
          %s187 = scalar_select %p186, %s181, 37
          %s188 = smul.addr %s187, 8
          %s189 = scalar_lea.vmem %s0, %s188
          %s190 = smul.u32 32, %s11
          %s191 = ssub.s32 38, %s190
          %p192 = scmp.lt.s32.totalorder %s191, 32
          %s193 = scalar_select %p192, %s191, 32
          %s194 = smul.u32 128, %s193
        $region36: #{tpu_custom_call.1} parent=31 // pred_fallthru
          _
      $region32: #{tpu_custom_call.1} parent=5 // pred_fallthru
        _
      %p195 = scmp.le.s32.totalorder 1, %s11
      %p196 = scmp.lt.s32.totalorder %s11, 3
      %p197 = pnand %p195, %p196
      %p198 = pneg %p197
      // Predicated region
      $region37: #{tpu_custom_call.1} parent=5 // pred_check
        _
      $region38: #{tpu_custom_call.1} parent=5 // pred_check_branch
        %200 = sbr.rel (%p197) target = $region40
      $region39: #{tpu_custom_call.1} parent=5 // pred_region
        %s201 = ssub.s32 %s11, 1
        %s202 = smul.u32 32, %s16
        %s203 = ssub.s32 38, %s202
        %p204 = scmp.lt.s32.totalorder %s203, 32
        %s205 = scalar_select %p204, %s203, 32
        %s206 = smul.u32 128, %s205
        %p207 = scmp.lt.s32.totalorder %s202, 37
        %s208 = scalar_select %p207, %s202, 37
        %s209 = smul.addr %s208, 8
        %s210 = scalar_lea.vmem %s0, %s209
        %p211 = pneg %p37
        %p212 = pneg %p34
        %p213 = pneg %p58
        %p214 = pneg %p55
        %p215 = pneg %p79
        %p216 = pneg %p76
        %p217 = pneg %p100
        %p218 = pneg %p97
        %p219 = pneg %p121
        %p220 = pneg %p118
        %p221 = pneg %p147
        %p222 = pneg %p144
        %s223 = sand.u32 %s134, 1
        %s224 = sand.u32 %s134, 1
        %s225 = smul.addr %s224, 256
        %s226 = scalar_lea.vmem [#allocation2], %s225
        %s227 = smul.u32 32, %s16
        %s228 = ssub.s32 38, %s227
        %p229 = scmp.lt.s32.totalorder %s228, 32
        %s230 = scalar_select %p229, %s228, 32
        %s231 = smul.u32 128, %s230
        %p232 = scmp.lt.s32.totalorder %s227, 37
        %s233 = scalar_select %p232, %s227, 37
        %s234 = smul.addr %s233, 8
        %s235 = scalar_lea.vmem %s0, %s234
        %s236 = smul.u32 32, %s16
        %s237 = ssub.s32 38, %s236
        %p238 = scmp.lt.s32.totalorder %s237, 32
        %s239 = scalar_select %p238, %s237, 32
        %s240 = smul.u32 128, %s239
        %s241 = smul.u32 32, %s16
        %s242 = ssub.s32 38, %s241
        %p243 = scmp.lt.s32.totalorder %s242, 32
        %s244 = scalar_select %p243, %s242, 32
        %s245 = smul.u32 128, %s244
        %v246 = vld [vmem:[%s235] sm:$0xff]
        %v247 = vld [vmem:[%s235 + $0x8] sm:$0xff]
        %v248 = vld [vmem:[%s235 + $0x10] sm:$0xff]
        %v249 = vld [vmem:[%s235 + $0x18] sm:$0xff]
        %v250 = vld [vmem:[%s235 + $0x20] sm:$0xff]
        %v251 = vld [vmem:[%s235 + $0x28] sm:$0xff]
        %v252 = vld [vmem:[%s235 + $0x30] sm:$0xff]
        %v253 = vld [vmem:[%s235 + $0x38] sm:$0xff]
        %v254 = vld [vmem:[%s235 + $0x40] sm:$0xff]
        %v255 = vld [vmem:[%s235 + $0x48] sm:$0xff]
        %v256 = vld [vmem:[%s235 + $0x50] sm:$0xff]
        %v257 = vld [vmem:[%s235 + $0x58] sm:$0xff]
        %v258 = vld [vmem:[%s235 + $0x60] sm:$0xff]
        %v259 = vld [vmem:[%s235 + $0x68] sm:$0xff]
        %v260 = vld [vmem:[%s235 + $0x70] sm:$0xff]
        %v261 = vld [vmem:[%s235 + $0x78] sm:$0xff]
        %v262 = vld [vmem:[%s235 + $0x80] sm:$0xff]
        %v263 = vld [vmem:[%s235 + $0x88] sm:$0xff]
        %v264 = vld [vmem:[%s235 + $0x90] sm:$0xff]
        %v265 = vld [vmem:[%s235 + $0x98] sm:$0xff]
        %v266 = vld [vmem:[%s235 + $0xa0] sm:$0xff]
        %v267 = vld [vmem:[%s235 + $0xa8] sm:$0xff]
        %v268 = vld [vmem:[%s235 + $0xb0] sm:$0xff]
        %v269 = vld [vmem:[%s235 + $0xb8] sm:$0xff]
        %v270 = vld [vmem:[%s235 + $0xc0] sm:$0xff]
        %v271 = vld [vmem:[%s235 + $0xc8] sm:$0xff]
        %v272 = vld [vmem:[%s235 + $0xd0] sm:$0xff]
        %v273 = vld [vmem:[%s235 + $0xd8] sm:$0xff]
        %v274 = vld [vmem:[%s235 + $0xe0] sm:$0xff]
        %v275 = vld [vmem:[%s235 + $0xe8] sm:$0xff]
        %v276 = vld [vmem:[%s235 + $0xf0] sm:$0xff]
        %v277 = vld [vmem:[%s235 + $0xf8] sm:$0xff]
        %v278 = vld [vmem:[%s1] sm:$0xff]
        %v279 = vld [vmem:[%s1 + $0x8] sm:$0xff]
        %v280 = vld [vmem:[%s1 + $0x10] sm:$0xff]
        %v281 = vld [vmem:[%s1 + $0x18] sm:$0xff]
        %v282 = vld [vmem:[%s2] sm:$0x1]
        %v284 = vlaneseq
        %v285 = vshrl.u32 %v284, 7
        %v286 = vsub.s32 0, %v285
        %v287 = vrot.slane %v282, %v286
        %vm289 = vcmask 261120
        %v291 = vsel %vm289, %v246, 0
        %v294 = vsel %vm289, %v247, 0
        %v297 = vsel %vm289, %v248, 0
        %v300 = vsel %vm289, %v249, 0
        %v303 = vsel %vm289, %v250, 0
        %v306 = vsel %vm289, %v251, 0
        %v309 = vsel %vm289, %v252, 0
        %v312 = vsel %vm289, %v253, 0
        %v315 = vsel %vm289, %v254, 0
        %v318 = vsel %vm289, %v255, 0
        %v321 = vsel %vm289, %v256, 0
        %v324 = vsel %vm289, %v257, 0
        %v327 = vsel %vm289, %v258, 0
        %v330 = vsel %vm289, %v259, 0
        %v333 = vsel %vm289, %v260, 0
        %v336 = vsel %vm289, %v261, 0
        %v339 = vsel %vm289, %v262, 0
        %v342 = vsel %vm289, %v263, 0
        %v345 = vsel %vm289, %v264, 0
        %v348 = vsel %vm289, %v265, 0
        %v351 = vsel %vm289, %v266, 0
        %v354 = vsel %vm289, %v267, 0
        %v357 = vsel %vm289, %v268, 0
        %v360 = vsel %vm289, %v269, 0
        %v363 = vsel %vm289, %v270, 0
        %v366 = vsel %vm289, %v271, 0
        %v369 = vsel %vm289, %v272, 0
        %v372 = vsel %vm289, %v273, 0
        %v375 = vsel %vm289, %v274, 0
        %v378 = vsel %vm289, %v275, 0
        %v381 = vsel %vm289, %v276, 0
        %v384 = vsel %vm289, %v277, 0
        %386 = vmatprep.subr.mxu0 0.0
        %387 = vmatpush1.msra.mxu0 %v278
        %388 = vmatprep.subr.mxu0 0.0
        %389 = vmatpush1.msra.mxu0 %v279
        %390 = vmatprep.subr.mxu0 0.0
        %391 = vmatpush1.msra.mxu0 %v280
        %392 = vmatprep.subr.mxu0 0.0
        %393 = vmatpush1.msra.mxu0 %v281
        %394 = vmatprep.subr.mxu0 0.0
        %395 = vmatpush1.msra.mxu0 0.0
        %396 = vmatprep.subr.mxu0 0.0
        %397 = vmatpush1.msra.mxu0 0.0
        %398 = vmatprep.subr.mxu0 0.0
        %399 = vmatpush1.msra.mxu0 0.0
        %400 = vmatprep.subr.mxu0 0.0
        %401 = vmatpush1.msra.mxu0 0.0
        %402 = vmatprep.subr.mxu0 0.0
        %403 = vmatpush1.msra.mxu0 0.0
        %404 = vmatprep.subr.mxu0 0.0
        %405 = vmatpush1.msra.mxu0 0.0
        %406 = vmatprep.subr.mxu0 0.0
        %407 = vmatpush1.msra.mxu0 0.0
        %408 = vmatprep.subr.mxu0 0.0
        %409 = vmatpush1.msra.mxu0 0.0
        %410 = vmatprep.subr.mxu0 0.0
        %411 = vmatpush1.msra.mxu0 0.0
        %412 = vmatprep.subr.mxu0 0.0
        %413 = vmatpush1.msra.mxu0 0.0
        %414 = vmatprep.subr.mxu0 0.0
        %415 = vmatpush1.msra.mxu0 0.0
        %416 = vmatprep.subr.mxu0 0.0
        %417 = vmatpush1.msra.mxu0 0.0
        %418 = vmatprep.subr.mxu0 0.0
        %419 = vmatpush1.msra.mxu0 0.0
        %420 = vmatprep.subr.mxu0 0.0
        %421 = vmatpush1.msra.mxu0 0.0
        %422 = vmatprep.subr.mxu0 0.0
        %423 = vmatpush1.msra.mxu0 0.0
        %424 = vmatprep.subr.mxu0 0.0
        %425 = vmatpush1.msra.mxu0 0.0
        %426 = vmatprep.subr.mxu0 0.0
        %427 = vmatpush1.msra.mxu0 0.0
        %428 = vmatprep.subr.mxu0 0.0
        %429 = vmatpush1.msra.mxu0 0.0
        %430 = vmatprep.subr.mxu0 0.0
        %431 = vmatpush1.msra.mxu0 0.0
        %432 = vmatprep.subr.mxu0 0.0
        %433 = vmatpush1.msra.mxu0 0.0
        %434 = vmatprep.subr.mxu0 0.0
        %435 = vmatpush1.msra.mxu0 0.0
        %436 = vmatprep.subr.mxu0 0.0
        %437 = vmatpush1.msra.mxu0 0.0
        %438 = vmatprep.subr.mxu0 0.0
        %439 = vmatpush1.msra.mxu0 0.0
        %440 = vmatprep.subr.mxu0 0.0
        %441 = vmatpush1.msra.mxu0 0.0
        %442 = vmatprep.subr.mxu0 0.0
        %443 = vmatpush1.msra.mxu0 0.0
        %444 = vmatprep.subr.mxu0 0.0
        %445 = vmatpush1.msra.mxu0 0.0
        %446 = vmatprep.subr.mxu0 0.0
        %447 = vmatpush1.msra.mxu0 0.0
        %448 = vmatprep.subr.mxu0 0.0
        %449 = vmatpush1.msra.mxu0 0.0
        %450 = vmatprep.mubr.f32.mxu0 0.0
        %451 = vmatmul.mubr.f32.gmra.mrb[0].mxu0 %v291
        %v452 = vpop.f32.mrb[0].mxu0
        %v453 = vadd.f32 %v287, %v452
        %v454 = vpop.f32.mrb[0].mxu0
        %455 = vmatprep.mubr.f32.mxu0 0.0
        %456 = vmatmul.mubr.f32.gmra.mrb[0].mxu0 %v294
        %v457 = vpop.f32.mrb[0].mxu0
        %v458 = vadd.f32 %v287, %v457
        %v459 = vpop.f32.mrb[0].mxu0
        %460 = vmatprep.mubr.f32.mxu0 0.0
        %461 = vmatmul.mubr.f32.gmra.mrb[0].mxu0 %v297
        %v462 = vpop.f32.mrb[0].mxu0
        %v463 = vadd.f32 %v287, %v462
        %v464 = vpop.f32.mrb[0].mxu0
        %465 = vmatprep.mubr.f32.mxu0 0.0
        %466 = vmatmul.mubr.f32.gmra.mrb[0].mxu0 %v300
        %v467 = vpop.f32.mrb[0].mxu0
        %v468 = vadd.f32 %v287, %v467
        %v469 = vpop.f32.mrb[0].mxu0
        %470 = vmatprep.mubr.f32.mxu0 0.0
        %471 = vmatmul.mubr.f32.gmra.mrb[0].mxu0 %v303
        %v472 = vpop.f32.mrb[0].mxu0
        %v473 = vadd.f32 %v287, %v472
        %v474 = vpop.f32.mrb[0].mxu0
        %475 = vmatprep.mubr.f32.mxu0 0.0
        %476 = vmatmul.mubr.f32.gmra.mrb[0].mxu0 %v306
        %v477 = vpop.f32.mrb[0].mxu0
        %v478 = vadd.f32 %v287, %v477
        %v479 = vpop.f32.mrb[0].mxu0
        %480 = vmatprep.mubr.f32.mxu0 0.0
        %481 = vmatmul.mubr.f32.gmra.mrb[0].mxu0 %v309
        %v482 = vpop.f32.mrb[0].mxu0
        %v483 = vadd.f32 %v287, %v482
        %v484 = vpop.f32.mrb[0].mxu0
        %485 = vmatprep.mubr.f32.mxu0 0.0
        %486 = vmatmul.mubr.f32.gmra.mrb[0].mxu0 %v312
        %v487 = vpop.f32.mrb[0].mxu0
        %v488 = vadd.f32 %v287, %v487
        %v489 = vpop.f32.mrb[0].mxu0
        %490 = vmatprep.mubr.f32.mxu0 0.0
        %491 = vmatmul.mubr.f32.gmra.mrb[0].mxu0 %v315
        %v492 = vpop.f32.mrb[0].mxu0
        %v493 = vadd.f32 %v287, %v492
        %v494 = vpop.f32.mrb[0].mxu0
        %495 = vmatprep.mubr.f32.mxu0 0.0
        %496 = vmatmul.mubr.f32.gmra.mrb[0].mxu0 %v318
        %v497 = vpop.f32.mrb[0].mxu0
        %v498 = vadd.f32 %v287, %v497
        %v499 = vpop.f32.mrb[0].mxu0
        %500 = vmatprep.mubr.f32.mxu0 0.0
        %501 = vmatmul.mubr.f32.gmra.mrb[0].mxu0 %v321
        %v502 = vpop.f32.mrb[0].mxu0
        %v503 = vadd.f32 %v287, %v502
        %v504 = vpop.f32.mrb[0].mxu0
        %505 = vmatprep.mubr.f32.mxu0 0.0
        %506 = vmatmul.mubr.f32.gmra.mrb[0].mxu0 %v324
        %v507 = vpop.f32.mrb[0].mxu0
        %v508 = vadd.f32 %v287, %v507
        %v509 = vpop.f32.mrb[0].mxu0
        %510 = vmatprep.mubr.f32.mxu0 0.0
        %511 = vmatmul.mubr.f32.gmra.mrb[0].mxu0 %v327
        %v512 = vpop.f32.mrb[0].mxu0
        %v513 = vadd.f32 %v287, %v512
        %v514 = vpop.f32.mrb[0].mxu0
        %515 = vmatprep.mubr.f32.mxu0 0.0
        %516 = vmatmul.mubr.f32.gmra.mrb[0].mxu0 %v330
        %v517 = vpop.f32.mrb[0].mxu0
        %v518 = vadd.f32 %v287, %v517
        %v519 = vpop.f32.mrb[0].mxu0
        %520 = vmatprep.mubr.f32.mxu0 0.0
        %521 = vmatmul.mubr.f32.gmra.mrb[0].mxu0 %v333
        %v522 = vpop.f32.mrb[0].mxu0
        %v523 = vadd.f32 %v287, %v522
        %v524 = vpop.f32.mrb[0].mxu0
        %525 = vmatprep.mubr.f32.mxu0 0.0
        %526 = vmatmul.mubr.f32.gmra.mrb[0].mxu0 %v336
        %v527 = vpop.f32.mrb[0].mxu0
        %v528 = vadd.f32 %v287, %v527
        %v529 = vpop.f32.mrb[0].mxu0
        %530 = vmatprep.mubr.f32.mxu0 0.0
        %531 = vmatmul.mubr.f32.gmra.mrb[0].mxu0 %v339
        %v532 = vpop.f32.mrb[0].mxu0
        %v533 = vadd.f32 %v287, %v532
        %v534 = vpop.f32.mrb[0].mxu0
        %535 = vmatprep.mubr.f32.mxu0 0.0
        %536 = vmatmul.mubr.f32.gmra.mrb[0].mxu0 %v342
        %v537 = vpop.f32.mrb[0].mxu0
        %v538 = vadd.f32 %v287, %v537
        %v539 = vpop.f32.mrb[0].mxu0
        %540 = vmatprep.mubr.f32.mxu0 0.0
        %541 = vmatmul.mubr.f32.gmra.mrb[0].mxu0 %v345
        %v542 = vpop.f32.mrb[0].mxu0
        %v543 = vadd.f32 %v287, %v542
        %v544 = vpop.f32.mrb[0].mxu0
        %545 = vmatprep.mubr.f32.mxu0 0.0
        %546 = vmatmul.mubr.f32.gmra.mrb[0].mxu0 %v348
        %v547 = vpop.f32.mrb[0].mxu0
        %v548 = vadd.f32 %v287, %v547
        %v549 = vpop.f32.mrb[0].mxu0
        %550 = vmatprep.mubr.f32.mxu0 0.0
        %551 = vmatmul.mubr.f32.gmra.mrb[0].mxu0 %v351
        %v552 = vpop.f32.mrb[0].mxu0
        %v553 = vadd.f32 %v287, %v552
        %v554 = vpop.f32.mrb[0].mxu0
        %555 = vmatprep.mubr.f32.mxu0 0.0
        %556 = vmatmul.mubr.f32.gmra.mrb[0].mxu0 %v354
        %v557 = vpop.f32.mrb[0].mxu0
        %v558 = vadd.f32 %v287, %v557
        %v559 = vpop.f32.mrb[0].mxu0
        %560 = vmatprep.mubr.f32.mxu0 0.0
        %561 = vmatmul.mubr.f32.gmra.mrb[0].mxu0 %v357
        %v562 = vpop.f32.mrb[0].mxu0
        %v563 = vadd.f32 %v287, %v562
        %v564 = vpop.f32.mrb[0].mxu0
        %565 = vmatprep.mubr.f32.mxu0 0.0
        %566 = vmatmul.mubr.f32.gmra.mrb[0].mxu0 %v360
        %v567 = vpop.f32.mrb[0].mxu0
        %v568 = vadd.f32 %v287, %v567
        %v569 = vpop.f32.mrb[0].mxu0
        %570 = vmatprep.mubr.f32.mxu0 0.0
        %571 = vmatmul.mubr.f32.gmra.mrb[0].mxu0 %v363
        %v572 = vpop.f32.mrb[0].mxu0
        %v573 = vadd.f32 %v287, %v572
        %v574 = vpop.f32.mrb[0].mxu0
        %575 = vmatprep.mubr.f32.mxu0 0.0
        %576 = vmatmul.mubr.f32.gmra.mrb[0].mxu0 %v366
        %v577 = vpop.f32.mrb[0].mxu0
        %v578 = vadd.f32 %v287, %v577
        %v579 = vpop.f32.mrb[0].mxu0
        %580 = vmatprep.mubr.f32.mxu0 0.0
        %581 = vmatmul.mubr.f32.gmra.mrb[0].mxu0 %v369
        %v582 = vpop.f32.mrb[0].mxu0
        %v583 = vadd.f32 %v287, %v582
        %v584 = vpop.f32.mrb[0].mxu0
        %585 = vmatprep.mubr.f32.mxu0 0.0
        %586 = vmatmul.mubr.f32.gmra.mrb[0].mxu0 %v372
        %v587 = vpop.f32.mrb[0].mxu0
        %v588 = vadd.f32 %v287, %v587
        %v589 = vpop.f32.mrb[0].mxu0
        %590 = vmatprep.mubr.f32.mxu0 0.0
        %591 = vmatmul.mubr.f32.gmra.mrb[0].mxu0 %v375
        %v592 = vpop.f32.mrb[0].mxu0
        %v593 = vadd.f32 %v287, %v592
        %v594 = vpop.f32.mrb[0].mxu0
        %595 = vmatprep.mubr.f32.mxu0 0.0
        %596 = vmatmul.mubr.f32.gmra.mrb[0].mxu0 %v378
        %v597 = vpop.f32.mrb[0].mxu0
        %v598 = vadd.f32 %v287, %v597
        %v599 = vpop.f32.mrb[0].mxu0
        %600 = vmatprep.mubr.f32.mxu0 0.0
        %601 = vmatmul.mubr.f32.gmra.mrb[0].mxu0 %v381
        %v602 = vpop.f32.mrb[0].mxu0
        %v603 = vadd.f32 %v287, %v602
        %v604 = vpop.f32.mrb[0].mxu0
        %605 = vmatprep.mubr.f32.mxu0 0.0
        %606 = vmatmul.mubr.f32.gmra.mrb[0].mxu0 %v384
        %v607 = vpop.f32.mrb[0].mxu0
        %v608 = vadd.f32 %v287, %v607
        %v609 = vpop.f32.mrb[0].mxu0
        %610 = vdwg.mxu0
        %v611 = vmax.f32 %v453, 0.0
        %v612 = vmax.f32 %v458, 0.0
        %v613 = vmax.f32 %v463, 0.0
        %v614 = vmax.f32 %v468, 0.0
        %v615 = vmax.f32 %v473, 0.0
        %v616 = vmax.f32 %v478, 0.0
        %v617 = vmax.f32 %v483, 0.0
        %v618 = vmax.f32 %v488, 0.0
        %v619 = vmax.f32 %v493, 0.0
        %v620 = vmax.f32 %v498, 0.0
        %v621 = vmax.f32 %v503, 0.0
        %v622 = vmax.f32 %v508, 0.0
        %v623 = vmax.f32 %v513, 0.0
        %v624 = vmax.f32 %v518, 0.0
        %v625 = vmax.f32 %v523, 0.0
        %v626 = vmax.f32 %v528, 0.0
        %v627 = vmax.f32 %v533, 0.0
        %v628 = vmax.f32 %v538, 0.0
        %v629 = vmax.f32 %v543, 0.0
        %v630 = vmax.f32 %v548, 0.0
        %v631 = vmax.f32 %v553, 0.0
        %v632 = vmax.f32 %v558, 0.0
        %v633 = vmax.f32 %v563, 0.0
        %v634 = vmax.f32 %v568, 0.0
        %v635 = vmax.f32 %v573, 0.0
        %v636 = vmax.f32 %v578, 0.0
        %v637 = vmax.f32 %v583, 0.0
        %v638 = vmax.f32 %v588, 0.0
        %v639 = vmax.f32 %v593, 0.0
        %v640 = vmax.f32 %v598, 0.0
        %v641 = vmax.f32 %v603, 0.0
        %v642 = vmax.f32 %v608, 0.0
        %v643 = vld [vmem:[%s3] sm:$0xff]
        %v644 = vld [vmem:[%s3 + $0x8] sm:$0xff]
        %v645 = vld [vmem:[%s3 + $0x10] sm:$0xff]
        %v646 = vld [vmem:[%s3 + $0x18] sm:$0xff]
        %v647 = vld [vmem:[%s3 + $0x20] sm:$0xff]
        %v648 = vld [vmem:[%s3 + $0x28] sm:$0xff]
        %v649 = vld [vmem:[%s3 + $0x30] sm:$0xff]
        %v650 = vld [vmem:[%s3 + $0x38] sm:$0xff]
        %v651 = vld [vmem:[%s3 + $0x40] sm:$0xff]
        %v652 = vld [vmem:[%s3 + $0x48] sm:$0xff]
        %v653 = vld [vmem:[%s3 + $0x50] sm:$0xff]
        %v654 = vld [vmem:[%s3 + $0x58] sm:$0xff]
        %v655 = vld [vmem:[%s3 + $0x60] sm:$0xff]
        %v656 = vld [vmem:[%s3 + $0x68] sm:$0xff]
        %v657 = vld [vmem:[%s3 + $0x70] sm:$0xff]
        %v658 = vld [vmem:[%s3 + $0x78] sm:$0xff]
        %v659 = vld [vmem:[%s4] sm:$0x1]
        %v661 = vlaneseq
        %v662 = vshrl.u32 %v661, 7
        %v663 = vsub.s32 0, %v662
        %v664 = vrot.slane %v659, %v663
        %666 = vmatprep.subr.mxu0 0.0
        %667 = vmatpush1.msra.mxu0 %v643
        %668 = vmatprep.subr.mxu0 0.0
        %669 = vmatpush1.msra.mxu0 %v644
        %670 = vmatprep.subr.mxu0 0.0
        %671 = vmatpush1.msra.mxu0 %v645
        %672 = vmatprep.subr.mxu0 0.0
        %673 = vmatpush1.msra.mxu0 %v646
        %674 = vmatprep.subr.mxu0 0.0
        %675 = vmatpush1.msra.mxu0 %v647
        %676 = vmatprep.subr.mxu0 0.0
        %677 = vmatpush1.msra.mxu0 %v648
        %678 = vmatprep.subr.mxu0 0.0
        %679 = vmatpush1.msra.mxu0 %v649
        %680 = vmatprep.subr.mxu0 0.0
        %681 = vmatpush1.msra.mxu0 %v650
        %682 = vmatprep.subr.mxu0 0.0
        %683 = vmatpush1.msra.mxu0 %v651
        %684 = vmatprep.subr.mxu0 0.0
        %685 = vmatpush1.msra.mxu0 %v652
        %686 = vmatprep.subr.mxu0 0.0
        %687 = vmatpush1.msra.mxu0 %v653
        %688 = vmatprep.subr.mxu0 0.0
        %689 = vmatpush1.msra.mxu0 %v654
        %690 = vmatprep.subr.mxu0 0.0
        %691 = vmatpush1.msra.mxu0 %v655
        %692 = vmatprep.subr.mxu0 0.0
        %693 = vmatpush1.msra.mxu0 %v656
        %694 = vmatprep.subr.mxu0 0.0
        %695 = vmatpush1.msra.mxu0 %v657
        %696 = vmatprep.subr.mxu0 0.0
        %697 = vmatpush1.msra.mxu0 %v658
        %698 = vmatprep.subr.mxu0 0.0
        %699 = vmatpush1.msra.mxu0 0.0
        %700 = vmatprep.subr.mxu0 0.0
        %701 = vmatpush1.msra.mxu0 0.0
        %702 = vmatprep.subr.mxu0 0.0
        %703 = vmatpush1.msra.mxu0 0.0
        %704 = vmatprep.subr.mxu0 0.0
        %705 = vmatpush1.msra.mxu0 0.0
        %706 = vmatprep.subr.mxu0 0.0
        %707 = vmatpush1.msra.mxu0 0.0
        %708 = vmatprep.subr.mxu0 0.0
        %709 = vmatpush1.msra.mxu0 0.0
        %710 = vmatprep.subr.mxu0 0.0
        %711 = vmatpush1.msra.mxu0 0.0
        %712 = vmatprep.subr.mxu0 0.0
        %713 = vmatpush1.msra.mxu0 0.0
        %714 = vmatprep.subr.mxu0 0.0
        %715 = vmatpush1.msra.mxu0 0.0
        %716 = vmatprep.subr.mxu0 0.0
        %717 = vmatpush1.msra.mxu0 0.0
        %718 = vmatprep.subr.mxu0 0.0
        %719 = vmatpush1.msra.mxu0 0.0
        %720 = vmatprep.subr.mxu0 0.0
        %721 = vmatpush1.msra.mxu0 0.0
        %722 = vmatprep.subr.mxu0 0.0
        %723 = vmatpush1.msra.mxu0 0.0
        %724 = vmatprep.subr.mxu0 0.0
        %725 = vmatpush1.msra.mxu0 0.0
        %726 = vmatprep.subr.mxu0 0.0
        %727 = vmatpush1.msra.mxu0 0.0
        %728 = vmatprep.subr.mxu0 0.0
        %729 = vmatpush1.msra.mxu0 0.0
        %730 = vmatprep.mubr.f32.mxu0 0.0
        %731 = vmatmul.mubr.f32.gmra.mrb[0].mxu0 %v611
        %v732 = vpop.f32.mrb[0].mxu0
        %v733 = vadd.f32 %v664, %v732
        %v734 = vpop.f32.mrb[0].mxu0
        %735 = vmatprep.mubr.f32.mxu0 0.0
        %736 = vmatmul.mubr.f32.gmra.mrb[0].mxu0 %v612
        %v737 = vpop.f32.mrb[0].mxu0
        %v738 = vadd.f32 %v664, %v737
        %v739 = vpop.f32.mrb[0].mxu0
        %740 = vmatprep.mubr.f32.mxu0 0.0
        %741 = vmatmul.mubr.f32.gmra.mrb[0].mxu0 %v613
        %v742 = vpop.f32.mrb[0].mxu0
        %v743 = vadd.f32 %v664, %v742
        %v744 = vpop.f32.mrb[0].mxu0
        %745 = vmatprep.mubr.f32.mxu0 0.0
        %746 = vmatmul.mubr.f32.gmra.mrb[0].mxu0 %v614
        %v747 = vpop.f32.mrb[0].mxu0
        %v748 = vadd.f32 %v664, %v747
        %v749 = vpop.f32.mrb[0].mxu0
        %750 = vmatprep.mubr.f32.mxu0 0.0
        %751 = vmatmul.mubr.f32.gmra.mrb[0].mxu0 %v615
        %v752 = vpop.f32.mrb[0].mxu0
        %v753 = vadd.f32 %v664, %v752
        %v754 = vpop.f32.mrb[0].mxu0
        %755 = vmatprep.mubr.f32.mxu0 0.0
        %756 = vmatmul.mubr.f32.gmra.mrb[0].mxu0 %v616
        %v757 = vpop.f32.mrb[0].mxu0
        %v758 = vadd.f32 %v664, %v757
        %v759 = vpop.f32.mrb[0].mxu0
        %760 = vmatprep.mubr.f32.mxu0 0.0
        %761 = vmatmul.mubr.f32.gmra.mrb[0].mxu0 %v617
        %v762 = vpop.f32.mrb[0].mxu0
        %v763 = vadd.f32 %v664, %v762
        %v764 = vpop.f32.mrb[0].mxu0
        %765 = vmatprep.mubr.f32.mxu0 0.0
        %766 = vmatmul.mubr.f32.gmra.mrb[0].mxu0 %v618
        %v767 = vpop.f32.mrb[0].mxu0
        %v768 = vadd.f32 %v664, %v767
        %v769 = vpop.f32.mrb[0].mxu0
        %770 = vmatprep.mubr.f32.mxu0 0.0
        %771 = vmatmul.mubr.f32.gmra.mrb[0].mxu0 %v619
        %v772 = vpop.f32.mrb[0].mxu0
        %v773 = vadd.f32 %v664, %v772
        %v774 = vpop.f32.mrb[0].mxu0
        %775 = vmatprep.mubr.f32.mxu0 0.0
        %776 = vmatmul.mubr.f32.gmra.mrb[0].mxu0 %v620
        %v777 = vpop.f32.mrb[0].mxu0
        %v778 = vadd.f32 %v664, %v777
        %v779 = vpop.f32.mrb[0].mxu0
        %780 = vmatprep.mubr.f32.mxu0 0.0
        %781 = vmatmul.mubr.f32.gmra.mrb[0].mxu0 %v621
        %v782 = vpop.f32.mrb[0].mxu0
        %v783 = vadd.f32 %v664, %v782
        %v784 = vpop.f32.mrb[0].mxu0
        %785 = vmatprep.mubr.f32.mxu0 0.0
        %786 = vmatmul.mubr.f32.gmra.mrb[0].mxu0 %v622
        %v787 = vpop.f32.mrb[0].mxu0
        %v788 = vadd.f32 %v664, %v787
        %v789 = vpop.f32.mrb[0].mxu0
        %790 = vmatprep.mubr.f32.mxu0 0.0
        %791 = vmatmul.mubr.f32.gmra.mrb[0].mxu0 %v623
        %v792 = vpop.f32.mrb[0].mxu0
        %v793 = vadd.f32 %v664, %v792
        %v794 = vpop.f32.mrb[0].mxu0
        %795 = vmatprep.mubr.f32.mxu0 0.0
        %796 = vmatmul.mubr.f32.gmra.mrb[0].mxu0 %v624
        %v797 = vpop.f32.mrb[0].mxu0
        %v798 = vadd.f32 %v664, %v797
        %v799 = vpop.f32.mrb[0].mxu0
        %800 = vmatprep.mubr.f32.mxu0 0.0
        %801 = vmatmul.mubr.f32.gmra.mrb[0].mxu0 %v625
        %v802 = vpop.f32.mrb[0].mxu0
        %v803 = vadd.f32 %v664, %v802
        %v804 = vpop.f32.mrb[0].mxu0
        %805 = vmatprep.mubr.f32.mxu0 0.0
        %806 = vmatmul.mubr.f32.gmra.mrb[0].mxu0 %v626
        %v807 = vpop.f32.mrb[0].mxu0
        %v808 = vadd.f32 %v664, %v807
        %v809 = vpop.f32.mrb[0].mxu0
        %810 = vmatprep.mubr.f32.mxu0 0.0
        %811 = vmatmul.mubr.f32.gmra.mrb[0].mxu0 %v627
        %v812 = vpop.f32.mrb[0].mxu0
        %v813 = vadd.f32 %v664, %v812
        %v814 = vpop.f32.mrb[0].mxu0
        %815 = vmatprep.mubr.f32.mxu0 0.0
        %816 = vmatmul.mubr.f32.gmra.mrb[0].mxu0 %v628
        %v817 = vpop.f32.mrb[0].mxu0
        %v818 = vadd.f32 %v664, %v817
        %v819 = vpop.f32.mrb[0].mxu0
        %820 = vmatprep.mubr.f32.mxu0 0.0
        %821 = vmatmul.mubr.f32.gmra.mrb[0].mxu0 %v629
        %v822 = vpop.f32.mrb[0].mxu0
        %v823 = vadd.f32 %v664, %v822
        %v824 = vpop.f32.mrb[0].mxu0
        %825 = vmatprep.mubr.f32.mxu0 0.0
        %826 = vmatmul.mubr.f32.gmra.mrb[0].mxu0 %v630
        %v827 = vpop.f32.mrb[0].mxu0
        %v828 = vadd.f32 %v664, %v827
        %v829 = vpop.f32.mrb[0].mxu0
        %830 = vmatprep.mubr.f32.mxu0 0.0
        %831 = vmatmul.mubr.f32.gmra.mrb[0].mxu0 %v631
        %v832 = vpop.f32.mrb[0].mxu0
        %v833 = vadd.f32 %v664, %v832
        %v834 = vpop.f32.mrb[0].mxu0
        %835 = vmatprep.mubr.f32.mxu0 0.0
        %836 = vmatmul.mubr.f32.gmra.mrb[0].mxu0 %v632
        %v837 = vpop.f32.mrb[0].mxu0
        %v838 = vadd.f32 %v664, %v837
        %v839 = vpop.f32.mrb[0].mxu0
        %840 = vmatprep.mubr.f32.mxu0 0.0
        %841 = vmatmul.mubr.f32.gmra.mrb[0].mxu0 %v633
        %v842 = vpop.f32.mrb[0].mxu0
        %v843 = vadd.f32 %v664, %v842
        %v844 = vpop.f32.mrb[0].mxu0
        %845 = vmatprep.mubr.f32.mxu0 0.0
        %846 = vmatmul.mubr.f32.gmra.mrb[0].mxu0 %v634
        %v847 = vpop.f32.mrb[0].mxu0
        %v848 = vadd.f32 %v664, %v847
        %v849 = vpop.f32.mrb[0].mxu0
        %850 = vmatprep.mubr.f32.mxu0 0.0
        %851 = vmatmul.mubr.f32.gmra.mrb[0].mxu0 %v635
        %v852 = vpop.f32.mrb[0].mxu0
        %v853 = vadd.f32 %v664, %v852
        %v854 = vpop.f32.mrb[0].mxu0
        %855 = vmatprep.mubr.f32.mxu0 0.0
        %856 = vmatmul.mubr.f32.gmra.mrb[0].mxu0 %v636
        %v857 = vpop.f32.mrb[0].mxu0
        %v858 = vadd.f32 %v664, %v857
        %v859 = vpop.f32.mrb[0].mxu0
        %860 = vmatprep.mubr.f32.mxu0 0.0
        %861 = vmatmul.mubr.f32.gmra.mrb[0].mxu0 %v637
        %v862 = vpop.f32.mrb[0].mxu0
        %v863 = vadd.f32 %v664, %v862
        %v864 = vpop.f32.mrb[0].mxu0
        %865 = vmatprep.mubr.f32.mxu0 0.0
        %866 = vmatmul.mubr.f32.gmra.mrb[0].mxu0 %v638
        %v867 = vpop.f32.mrb[0].mxu0
        %v868 = vadd.f32 %v664, %v867
        %v869 = vpop.f32.mrb[0].mxu0
        %870 = vmatprep.mubr.f32.mxu0 0.0
        %871 = vmatmul.mubr.f32.gmra.mrb[0].mxu0 %v639
        %v872 = vpop.f32.mrb[0].mxu0
        %v873 = vadd.f32 %v664, %v872
        %v874 = vpop.f32.mrb[0].mxu0
        %875 = vmatprep.mubr.f32.mxu0 0.0
        %876 = vmatmul.mubr.f32.gmra.mrb[0].mxu0 %v640
        %v877 = vpop.f32.mrb[0].mxu0
        %v878 = vadd.f32 %v664, %v877
        %v879 = vpop.f32.mrb[0].mxu0
        %880 = vmatprep.mubr.f32.mxu0 0.0
        %881 = vmatmul.mubr.f32.gmra.mrb[0].mxu0 %v641
        %v882 = vpop.f32.mrb[0].mxu0
        %v883 = vadd.f32 %v664, %v882
        %v884 = vpop.f32.mrb[0].mxu0
        %885 = vmatprep.mubr.f32.mxu0 0.0
        %886 = vmatmul.mubr.f32.gmra.mrb[0].mxu0 %v642
        %v887 = vpop.f32.mrb[0].mxu0
        %v888 = vadd.f32 %v664, %v887
        %v889 = vpop.f32.mrb[0].mxu0
        %890 = vdwg.mxu0
        %891 = vst.msk [vmem:[%s226] sm:$0xff] %vm289, %v733
        %892 = vst.msk [vmem:[%s226 + $0x8] sm:$0xff] %vm289, %v738
        %893 = vst.msk [vmem:[%s226 + $0x10] sm:$0xff] %vm289, %v743
        %894 = vst.msk [vmem:[%s226 + $0x18] sm:$0xff] %vm289, %v748
        %895 = vst.msk [vmem:[%s226 + $0x20] sm:$0xff] %vm289, %v753
        %896 = vst.msk [vmem:[%s226 + $0x28] sm:$0xff] %vm289, %v758
        %897 = vst.msk [vmem:[%s226 + $0x30] sm:$0xff] %vm289, %v763
        %898 = vst.msk [vmem:[%s226 + $0x38] sm:$0xff] %vm289, %v768
        %899 = vst.msk [vmem:[%s226 + $0x40] sm:$0xff] %vm289, %v773
        %900 = vst.msk [vmem:[%s226 + $0x48] sm:$0xff] %vm289, %v778
        %901 = vst.msk [vmem:[%s226 + $0x50] sm:$0xff] %vm289, %v783
        %902 = vst.msk [vmem:[%s226 + $0x58] sm:$0xff] %vm289, %v788
        %903 = vst.msk [vmem:[%s226 + $0x60] sm:$0xff] %vm289, %v793
        %904 = vst.msk [vmem:[%s226 + $0x68] sm:$0xff] %vm289, %v798
        %905 = vst.msk [vmem:[%s226 + $0x70] sm:$0xff] %vm289, %v803
        %906 = vst.msk [vmem:[%s226 + $0x78] sm:$0xff] %vm289, %v808
        %907 = vst.msk [vmem:[%s226 + $0x80] sm:$0xff] %vm289, %v813
        %908 = vst.msk [vmem:[%s226 + $0x88] sm:$0xff] %vm289, %v818
        %909 = vst.msk [vmem:[%s226 + $0x90] sm:$0xff] %vm289, %v823
        %910 = vst.msk [vmem:[%s226 + $0x98] sm:$0xff] %vm289, %v828
        %911 = vst.msk [vmem:[%s226 + $0xa0] sm:$0xff] %vm289, %v833
        %912 = vst.msk [vmem:[%s226 + $0xa8] sm:$0xff] %vm289, %v838
        %913 = vst.msk [vmem:[%s226 + $0xb0] sm:$0xff] %vm289, %v843
        %914 = vst.msk [vmem:[%s226 + $0xb8] sm:$0xff] %vm289, %v848
        %915 = vst.msk [vmem:[%s226 + $0xc0] sm:$0xff] %vm289, %v853
        %916 = vst.msk [vmem:[%s226 + $0xc8] sm:$0xff] %vm289, %v858
        %917 = vst.msk [vmem:[%s226 + $0xd0] sm:$0xff] %vm289, %v863
        %918 = vst.msk [vmem:[%s226 + $0xd8] sm:$0xff] %vm289, %v868
        %919 = vst.msk [vmem:[%s226 + $0xe0] sm:$0xff] %vm289, %v873
        %920 = vst.msk [vmem:[%s226 + $0xe8] sm:$0xff] %vm289, %v878
        %921 = vst.msk [vmem:[%s226 + $0xf0] sm:$0xff] %vm289, %v883
        %922 = vst.msk [vmem:[%s226 + $0xf8] sm:$0xff] %vm289, %v888
        %s923 = sand.u32 %s134, 1
        %s924 = sand.u32 %s134, 1
        %s925 = smul.addr %s924, 256
        %s926 = scalar_lea.vmem [#allocation2], %s925
        // Predicated region
        $region41: #{tpu_custom_call.1} parent=39 // pred_check
          %p927 = pneg %p144
        $region42: #{tpu_custom_call.1} parent=39 // pred_check_branch
          %929 = sbr.rel (%p927) target = $region44
        $region43: #{tpu_custom_call.1} parent=39 // pred_region
          %s930 = smul.u32 32, %s16
          %s931 = ssub.s32 38, %s930
          %p932 = scmp.lt.s32.totalorder %s931, 32
          %s933 = scalar_select %p932, %s931, 32
          %s934 = smul.u32 128, %s933
          %p935 = scmp.ne.s32.totalorder 0, %s934
          %s936 = smul.addr %s930, 8
          %s937 = scalar_lea.vmem %s5, %s936
          // Predicated region
          $region45: #{tpu_custom_call.1} parent=43 // pred_check
            %p938 = pneg %p935
          $region46: #{tpu_custom_call.1} parent=43 // pred_check_branch
            %940 = sbr.rel (%p938) target = $region48
          $region47: #{tpu_custom_call.1} parent=43 // pred_region
            // Predicated region
            $region49: #{tpu_custom_call.1} parent=47 // pred_check
              _
            $region50: #{tpu_custom_call.1} parent=47 // pred_check_branch
              %942 = sbr.rel (0) target = $region52
            $region51: #{tpu_custom_call.1} parent=47 // pred_region
              // Predicated region
              $region71: #{tpu_custom_call.1} parent=51 // pred_check
                _
              $region72: #{tpu_custom_call.1} parent=51 // pred_check_branch
                %1053 = sbr.rel (0) target = $region74
              $region73: #{tpu_custom_call.1} parent=51 // pred_region
                %s1054 = sshrl.u32 %s933, 5
                // While loop
                $region75: #{tpu_custom_call.1} parent=73 // loop_pre_header
                  _
                $region76: #{tpu_custom_call.1} parent=73 // loop_header
                  %s1056 = sphi 0, %s1058
                  %p1057 = scmp.ge.s32.totalorder %s1056, %s1054
                  %s1061 = sphi 0, %s1130
                  %s1062 = sphi %s926, %s1133
                  %s1063 = sphi %s937, %s1134
                $region77: #{tpu_custom_call.1} parent=73 // loop_header_branch
                  %1060 = sbr.rel (%p1057) target = $region81
                $region78: #{tpu_custom_call.1} parent=73 // loop_body
                  %v1064 = vld [vmem:[%s1062] sm:$0xff]
                  %1065 = vst [vmem:[%s1063] sm:$0xff] %v1064
                  %v1066 = vld [vmem:[%s1062 + $0x8] sm:$0xff]
                  %1067 = vst [vmem:[%s1063 + $0x8] sm:$0xff] %v1066
                  %v1068 = vld [vmem:[%s1062 + $0x10] sm:$0xff]
                  %1069 = vst [vmem:[%s1063 + $0x10] sm:$0xff] %v1068
                  %v1070 = vld [vmem:[%s1062 + $0x18] sm:$0xff]
                  %1071 = vst [vmem:[%s1063 + $0x18] sm:$0xff] %v1070
                  %v1072 = vld [vmem:[%s1062 + $0x20] sm:$0xff]
                  %1073 = vst [vmem:[%s1063 + $0x20] sm:$0xff] %v1072
                  %v1074 = vld [vmem:[%s1062 + $0x28] sm:$0xff]
                  %1075 = vst [vmem:[%s1063 + $0x28] sm:$0xff] %v1074
                  %v1076 = vld [vmem:[%s1062 + $0x30] sm:$0xff]
                  %1077 = vst [vmem:[%s1063 + $0x30] sm:$0xff] %v1076
                  %v1078 = vld [vmem:[%s1062 + $0x38] sm:$0xff]
                  %1079 = vst [vmem:[%s1063 + $0x38] sm:$0xff] %v1078
                  %v1080 = vld [vmem:[%s1062 + $0x40] sm:$0xff]
                  %1081 = vst [vmem:[%s1063 + $0x40] sm:$0xff] %v1080
                  %v1082 = vld [vmem:[%s1062 + $0x48] sm:$0xff]
                  %1083 = vst [vmem:[%s1063 + $0x48] sm:$0xff] %v1082
                  %v1084 = vld [vmem:[%s1062 + $0x50] sm:$0xff]
                  %1085 = vst [vmem:[%s1063 + $0x50] sm:$0xff] %v1084
                  %v1086 = vld [vmem:[%s1062 + $0x58] sm:$0xff]
                  %1087 = vst [vmem:[%s1063 + $0x58] sm:$0xff] %v1086
                  %v1088 = vld [vmem:[%s1062 + $0x60] sm:$0xff]
                  %1089 = vst [vmem:[%s1063 + $0x60] sm:$0xff] %v1088
                  %v1090 = vld [vmem:[%s1062 + $0x68] sm:$0xff]
                  %1091 = vst [vmem:[%s1063 + $0x68] sm:$0xff] %v1090
                  %v1092 = vld [vmem:[%s1062 + $0x70] sm:$0xff]
                  %1093 = vst [vmem:[%s1063 + $0x70] sm:$0xff] %v1092
                  %v1094 = vld [vmem:[%s1062 + $0x78] sm:$0xff]
                  %1095 = vst [vmem:[%s1063 + $0x78] sm:$0xff] %v1094
                  %v1096 = vld [vmem:[%s1062 + $0x80] sm:$0xff]
                  %1097 = vst [vmem:[%s1063 + $0x80] sm:$0xff] %v1096
                  %v1098 = vld [vmem:[%s1062 + $0x88] sm:$0xff]
                  %1099 = vst [vmem:[%s1063 + $0x88] sm:$0xff] %v1098
                  %v1100 = vld [vmem:[%s1062 + $0x90] sm:$0xff]
                  %1101 = vst [vmem:[%s1063 + $0x90] sm:$0xff] %v1100
                  %v1102 = vld [vmem:[%s1062 + $0x98] sm:$0xff]
                  %1103 = vst [vmem:[%s1063 + $0x98] sm:$0xff] %v1102
                  %v1104 = vld [vmem:[%s1062 + $0xa0] sm:$0xff]
                  %1105 = vst [vmem:[%s1063 + $0xa0] sm:$0xff] %v1104
                  %v1106 = vld [vmem:[%s1062 + $0xa8] sm:$0xff]
                  %1107 = vst [vmem:[%s1063 + $0xa8] sm:$0xff] %v1106
                  %v1108 = vld [vmem:[%s1062 + $0xb0] sm:$0xff]
                  %1109 = vst [vmem:[%s1063 + $0xb0] sm:$0xff] %v1108
                  %v1110 = vld [vmem:[%s1062 + $0xb8] sm:$0xff]
                  %1111 = vst [vmem:[%s1063 + $0xb8] sm:$0xff] %v1110
                  %v1112 = vld [vmem:[%s1062 + $0xc0] sm:$0xff]
                  %1113 = vst [vmem:[%s1063 + $0xc0] sm:$0xff] %v1112
                  %v1114 = vld [vmem:[%s1062 + $0xc8] sm:$0xff]
                  %1115 = vst [vmem:[%s1063 + $0xc8] sm:$0xff] %v1114
                  %v1116 = vld [vmem:[%s1062 + $0xd0] sm:$0xff]
                  %1117 = vst [vmem:[%s1063 + $0xd0] sm:$0xff] %v1116
                  %v1118 = vld [vmem:[%s1062 + $0xd8] sm:$0xff]
                  %1119 = vst [vmem:[%s1063 + $0xd8] sm:$0xff] %v1118
                  %v1120 = vld [vmem:[%s1062 + $0xe0] sm:$0xff]
                  %1121 = vst [vmem:[%s1063 + $0xe0] sm:$0xff] %v1120
                  %v1122 = vld [vmem:[%s1062 + $0xe8] sm:$0xff]
                  %1123 = vst [vmem:[%s1063 + $0xe8] sm:$0xff] %v1122
                  %v1124 = vld [vmem:[%s1062 + $0xf0] sm:$0xff]
                  %1125 = vst [vmem:[%s1063 + $0xf0] sm:$0xff] %v1124
                  %v1126 = vld [vmem:[%s1062 + $0xf8] sm:$0xff]
                  %1127 = vst [vmem:[%s1063 + $0xf8] sm:$0xff] %v1126
                  %s1128 = sadd.s32 1, %s1061
                  %p1129 = scmp.ge.s32.totalorder %s1128, %s1054
                  %s1130 = scalar_select %p1129, 0, %s1128
                  %s1131 = smul.u32 %s1130, 256
                  %s1132 = smul.u32 %s1130, 256
                  %s1133 = scalar_lea.vmem %s926, %s1131 [#allocation2]
                  %s1134 = scalar_lea.vmem %s937, %s1132
                $region79: #{tpu_custom_call.1} parent=73 // loop_footer
                  %s1058 = sadd.s32 %s1056, 1
                $region80: #{tpu_custom_call.1} parent=73 // loop_footer_branch
                  %1055 = sbr.rel target = $region76
                $region81: #{tpu_custom_call.1} parent=73 // loop_exit
                  _
                %s1135 = sshrl.u32 %s933, 5
                %s1136 = sand.u32 %s933, 31
                %s1137 = smul.u32 %s1135, 32
                %s1138 = smul.u32 8, %s1137
                %s1139 = scalar_lea.vmem %s926, %s1138 [#allocation2]
                %s1140 = smul.u32 8, %s1137
                %s1141 = scalar_lea.vmem %s937, %s1140
                // While loop
                $region82: #{tpu_custom_call.1} parent=73 // loop_pre_header
                  _
                $region83: #{tpu_custom_call.1} parent=73 // loop_header
                  %s1143 = sphi 0, %s1145
                  %p1144 = scmp.ge.s32.totalorder %s1143, %s1136
                  %s1148 = sphi 0, %s1155
                  %s1149 = sphi %s1139, %s1158
                  %s1150 = sphi %s1141, %s1159
                $region84: #{tpu_custom_call.1} parent=73 // loop_header_branch
                  %1147 = sbr.rel (%p1144) target = $region88
                $region85: #{tpu_custom_call.1} parent=73 // loop_body
                  %v1151 = vld [vmem:[%s1149] sm:$0xff]
                  %1152 = vst [vmem:[%s1150] sm:$0xff] %v1151
                  %s1153 = sadd.s32 1, %s1148
                  %p1154 = scmp.ge.s32.totalorder %s1153, %s1136
                  %s1155 = scalar_select %p1154, 0, %s1153
                  %s1156 = smul.u32 %s1155, 8
                  %s1157 = smul.u32 %s1155, 8
                  %s1158 = scalar_lea.vmem %s1139, %s1156 [#allocation2]
                  %s1159 = scalar_lea.vmem %s1141, %s1157
                $region86: #{tpu_custom_call.1} parent=73 // loop_footer
                  %s1145 = sadd.s32 %s1143, 1
                $region87: #{tpu_custom_call.1} parent=73 // loop_footer_branch
                  %1142 = sbr.rel target = $region83
                $region88: #{tpu_custom_call.1} parent=73 // loop_exit
                  _
              $region74: #{tpu_custom_call.1} parent=51 // pred_fallthru
                _
              // Predicated region
              $region89: #{tpu_custom_call.1} parent=51 // pred_check
                _
              $region90: #{tpu_custom_call.1} parent=51 // pred_check_branch
                %1161 = sbr.rel target = $region92
              $region91: #{tpu_custom_call.1} parent=51 // pred_region
                _
              $region92: #{tpu_custom_call.1} parent=51 // pred_fallthru
                _
            $region52: #{tpu_custom_call.1} parent=47 // pred_fallthru
              _
            // Predicated region
            $region53: #{tpu_custom_call.1} parent=47 // pred_check
              _
            $region54: #{tpu_custom_call.1} parent=47 // pred_check_branch
              %944 = sbr.rel target = $region56
            $region55: #{tpu_custom_call.1} parent=47 // pred_region
              %s946 = sshrl.u32 %s933, 5
              // While loop
              $region57: #{tpu_custom_call.1} parent=55 // loop_pre_header
                _
              $region58: #{tpu_custom_call.1} parent=55 // loop_header
                %s948 = sphi 0, %s950
                %p949 = scmp.ge.s32.totalorder %s948, %s946
                %s953 = sphi 0, %s1022
                %s954 = sphi %s926, %s1025
                %s955 = sphi %s937, %s1026
              $region59: #{tpu_custom_call.1} parent=55 // loop_header_branch
                %952 = sbr.rel (%p949) target = $region63
              $region60: #{tpu_custom_call.1} parent=55 // loop_body
                %v956 = vld [vmem:[%s954] sm:$0xff]
                %957 = vst [vmem:[%s955] sm:$0xff] %v956
                %v958 = vld [vmem:[%s954 + $0x8] sm:$0xff]
                %959 = vst [vmem:[%s955 + $0x8] sm:$0xff] %v958
                %v960 = vld [vmem:[%s954 + $0x10] sm:$0xff]
                %961 = vst [vmem:[%s955 + $0x10] sm:$0xff] %v960
                %v962 = vld [vmem:[%s954 + $0x18] sm:$0xff]
                %963 = vst [vmem:[%s955 + $0x18] sm:$0xff] %v962
                %v964 = vld [vmem:[%s954 + $0x20] sm:$0xff]
                %965 = vst [vmem:[%s955 + $0x20] sm:$0xff] %v964
                %v966 = vld [vmem:[%s954 + $0x28] sm:$0xff]
                %967 = vst [vmem:[%s955 + $0x28] sm:$0xff] %v966
                %v968 = vld [vmem:[%s954 + $0x30] sm:$0xff]
                %969 = vst [vmem:[%s955 + $0x30] sm:$0xff] %v968
                %v970 = vld [vmem:[%s954 + $0x38] sm:$0xff]
                %971 = vst [vmem:[%s955 + $0x38] sm:$0xff] %v970
                %v972 = vld [vmem:[%s954 + $0x40] sm:$0xff]
                %973 = vst [vmem:[%s955 + $0x40] sm:$0xff] %v972
                %v974 = vld [vmem:[%s954 + $0x48] sm:$0xff]
                %975 = vst [vmem:[%s955 + $0x48] sm:$0xff] %v974
                %v976 = vld [vmem:[%s954 + $0x50] sm:$0xff]
                %977 = vst [vmem:[%s955 + $0x50] sm:$0xff] %v976
                %v978 = vld [vmem:[%s954 + $0x58] sm:$0xff]
                %979 = vst [vmem:[%s955 + $0x58] sm:$0xff] %v978
                %v980 = vld [vmem:[%s954 + $0x60] sm:$0xff]
                %981 = vst [vmem:[%s955 + $0x60] sm:$0xff] %v980
                %v982 = vld [vmem:[%s954 + $0x68] sm:$0xff]
                %983 = vst [vmem:[%s955 + $0x68] sm:$0xff] %v982
                %v984 = vld [vmem:[%s954 + $0x70] sm:$0xff]
                %985 = vst [vmem:[%s955 + $0x70] sm:$0xff] %v984
                %v986 = vld [vmem:[%s954 + $0x78] sm:$0xff]
                %987 = vst [vmem:[%s955 + $0x78] sm:$0xff] %v986
                %v988 = vld [vmem:[%s954 + $0x80] sm:$0xff]
                %989 = vst [vmem:[%s955 + $0x80] sm:$0xff] %v988
                %v990 = vld [vmem:[%s954 + $0x88] sm:$0xff]
                %991 = vst [vmem:[%s955 + $0x88] sm:$0xff] %v990
                %v992 = vld [vmem:[%s954 + $0x90] sm:$0xff]
                %993 = vst [vmem:[%s955 + $0x90] sm:$0xff] %v992
                %v994 = vld [vmem:[%s954 + $0x98] sm:$0xff]
                %995 = vst [vmem:[%s955 + $0x98] sm:$0xff] %v994
                %v996 = vld [vmem:[%s954 + $0xa0] sm:$0xff]
                %997 = vst [vmem:[%s955 + $0xa0] sm:$0xff] %v996
                %v998 = vld [vmem:[%s954 + $0xa8] sm:$0xff]
                %999 = vst [vmem:[%s955 + $0xa8] sm:$0xff] %v998
                %v1000 = vld [vmem:[%s954 + $0xb0] sm:$0xff]
                %1001 = vst [vmem:[%s955 + $0xb0] sm:$0xff] %v1000
                %v1002 = vld [vmem:[%s954 + $0xb8] sm:$0xff]
                %1003 = vst [vmem:[%s955 + $0xb8] sm:$0xff] %v1002
                %v1004 = vld [vmem:[%s954 + $0xc0] sm:$0xff]
                %1005 = vst [vmem:[%s955 + $0xc0] sm:$0xff] %v1004
                %v1006 = vld [vmem:[%s954 + $0xc8] sm:$0xff]
                %1007 = vst [vmem:[%s955 + $0xc8] sm:$0xff] %v1006
                %v1008 = vld [vmem:[%s954 + $0xd0] sm:$0xff]
                %1009 = vst [vmem:[%s955 + $0xd0] sm:$0xff] %v1008
                %v1010 = vld [vmem:[%s954 + $0xd8] sm:$0xff]
                %1011 = vst [vmem:[%s955 + $0xd8] sm:$0xff] %v1010
                %v1012 = vld [vmem:[%s954 + $0xe0] sm:$0xff]
                %1013 = vst [vmem:[%s955 + $0xe0] sm:$0xff] %v1012
                %v1014 = vld [vmem:[%s954 + $0xe8] sm:$0xff]
                %1015 = vst [vmem:[%s955 + $0xe8] sm:$0xff] %v1014
                %v1016 = vld [vmem:[%s954 + $0xf0] sm:$0xff]
                %1017 = vst [vmem:[%s955 + $0xf0] sm:$0xff] %v1016
                %v1018 = vld [vmem:[%s954 + $0xf8] sm:$0xff]
                %1019 = vst [vmem:[%s955 + $0xf8] sm:$0xff] %v1018
                %s1020 = sadd.s32 1, %s953
                %p1021 = scmp.ge.s32.totalorder %s1020, %s946
                %s1022 = scalar_select %p1021, 0, %s1020
                %s1023 = smul.u32 %s1022, 256
                %s1024 = smul.u32 %s1022, 256
                %s1025 = scalar_lea.vmem %s926, %s1023 [#allocation2]
                %s1026 = scalar_lea.vmem %s937, %s1024
              $region61: #{tpu_custom_call.1} parent=55 // loop_footer
                %s950 = sadd.s32 %s948, 1
              $region62: #{tpu_custom_call.1} parent=55 // loop_footer_branch
                %947 = sbr.rel target = $region58
              $region63: #{tpu_custom_call.1} parent=55 // loop_exit
                _
              %s1027 = sshrl.u32 %s933, 5
              %s1028 = sand.u32 %s933, 31
              %s1029 = smul.u32 %s1027, 32
              %s1030 = smul.u32 8, %s1029
              %s1031 = scalar_lea.vmem %s926, %s1030 [#allocation2]
              %s1032 = smul.u32 8, %s1029
              %s1033 = scalar_lea.vmem %s937, %s1032
              // While loop
              $region64: #{tpu_custom_call.1} parent=55 // loop_pre_header
                _
              $region65: #{tpu_custom_call.1} parent=55 // loop_header
                %s1035 = sphi 0, %s1037
                %p1036 = scmp.ge.s32.totalorder %s1035, %s1028
                %s1040 = sphi 0, %s1047
                %s1041 = sphi %s1031, %s1050
                %s1042 = sphi %s1033, %s1051
              $region66: #{tpu_custom_call.1} parent=55 // loop_header_branch
                %1039 = sbr.rel (%p1036) target = $region70
              $region67: #{tpu_custom_call.1} parent=55 // loop_body
                %v1043 = vld [vmem:[%s1041] sm:$0xff]
                %1044 = vst [vmem:[%s1042] sm:$0xff] %v1043
                %s1045 = sadd.s32 1, %s1040
                %p1046 = scmp.ge.s32.totalorder %s1045, %s1028
                %s1047 = scalar_select %p1046, 0, %s1045
                %s1048 = smul.u32 %s1047, 8
                %s1049 = smul.u32 %s1047, 8
                %s1050 = scalar_lea.vmem %s1031, %s1048 [#allocation2]
                %s1051 = scalar_lea.vmem %s1033, %s1049
              $region68: #{tpu_custom_call.1} parent=55 // loop_footer
                %s1037 = sadd.s32 %s1035, 1
              $region69: #{tpu_custom_call.1} parent=55 // loop_footer_branch
                %1034 = sbr.rel target = $region65
              $region70: #{tpu_custom_call.1} parent=55 // loop_exit
                _
            $region56: #{tpu_custom_call.1} parent=47 // pred_fallthru
              _
          $region48: #{tpu_custom_call.1} parent=43 // pred_fallthru
            _
          %1162 = vnop
        $region44: #{tpu_custom_call.1} parent=39 // pred_fallthru
          _
      $region40: #{tpu_custom_call.1} parent=5 // pred_fallthru
        _
      %p1163 = scmp.le.s32.totalorder 2, %s11
      // Predicated region
      $region93: #{tpu_custom_call.1} parent=5 // pred_check
        %p1164 = pneg %p1163
      $region94: #{tpu_custom_call.1} parent=5 // pred_check_branch
        %1166 = sbr.rel (%p1164) target = $region96
      $region95: #{tpu_custom_call.1} parent=5 // pred_region
        %s1167 = ssub.s32 %s11, 2
        // Predicated region
        $region97: #{tpu_custom_call.1} parent=95 // pred_check
          %p1168 = pneg %p150
        $region98: #{tpu_custom_call.1} parent=95 // pred_check_branch
          %1170 = sbr.rel (%p1168) target = $region100
        $region99: #{tpu_custom_call.1} parent=95 // pred_region
          %s1171 = sand.u32 %s135, 1
          %s1172 = sand.u32 %s135, 1
          %s1173 = smul.addr %s1172, 256
          %s1174 = scalar_lea.vmem [#allocation2], %s1173
        $region100: #{tpu_custom_call.1} parent=95 // pred_fallthru
          _
      $region96: #{tpu_custom_call.1} parent=5 // pred_fallthru
        _
    $region6: #{tpu_custom_call.1} parent=1 // loop_footer
      %s15 = sadd.s32 1, %s11
    $region7: #{tpu_custom_call.1} parent=1 // loop_footer_branch
      %10 = sbr.rel target = $region3
    $region8: #{tpu_custom_call.1} parent=1 // loop_exit
      _

// kernel: tpu_custom_call.1
$region0: #{tpu_custom_call.1}
  #allocation0 [shape = 'u32[]', space=smem, size = 0x4, offset = 0x4, fixed_abs, tag = 'smem constant byte address 0x4 - core index']
  #allocation1 [shape = 'u32[144,128]{1,0:T(1,128)}', space=vmem, size = 0x12000, scoped, tag = 'internal scratch']
  %s0 = inlined_call_operand.vmem [shape: f32[300,32], index: 0, kind: input, shape index: {}]
  %s1 = inlined_call_operand.vmem [shape: f32[32,128], index: 1, kind: input, shape index: {}]
  %s2 = inlined_call_operand.vmem [shape: f32[1,128], index: 2, kind: input, shape index: {}]
  %s3 = inlined_call_operand.vmem [shape: f32[128,32], index: 3, kind: input, shape index: {}]
  %s4 = inlined_call_operand.vmem [shape: f32[1,32], index: 4, kind: input, shape index: {}]
  %s5 = inlined_call_operand.vmem [shape: f32[300,32], index: 5, kind: output, shape index: {}]
  %s6 = sld [smem:[#allocation0]]
  $region101: #{tpu_custom_call.1} parent=0
    _
  %s8 = ssub.s32 1, %s6
  %s9 = scalar_select 0, %s8, %s6
  $region1: #{tpu_custom_call.1} parent=0
    #allocation2 [shape = 'u8[262144]{0}', space=vmem, size = 0x40000, scoped, tag = 'output window, operand 0']
    loop: start=0, step=1, limit=4
    $region2: #{tpu_custom_call.1} parent=1 // loop_pre_header
      _
    $region3: #{tpu_custom_call.1} parent=1 // loop_header
      %s11 = sphi 0, %s15
      %p12 = scmp.ge.s32.totalorder %s11, 4
      %s21 = sphi 0, %s23
      %s24 = sphi 0, %s21
      %s25 = sphi 0, %s24
      %s41 = sphi 0, %s25
      %s45 = sphi 0, %s45
      %s47 = sphi 0, %s45
      %s48 = sphi 0, %s47
      %s62 = sphi 0, %s48
      %s66 = sphi 0, %s66
      %s68 = sphi 0, %s66
      %s69 = sphi 0, %s68
      %s83 = sphi 0, %s69
      %s87 = sphi 0, %s87
      %s89 = sphi 0, %s87
      %s90 = sphi 0, %s89
      %s104 = sphi 0, %s90
      %s108 = sphi 0, %s108
      %s110 = sphi 0, %s108
      %s111 = sphi 0, %s110
      %s125 = sphi 0, %s111
      %s131 = sphi 0, %s133
      %s134 = sphi 0, %s131
      %s135 = sphi 0, %s134
      %s151 = sphi 0, %s135
    $region4: #{tpu_custom_call.1} parent=1 // loop_header_branch
      %14 = sbr.rel (%p12) target = $region8
    $region5: #{tpu_custom_call.1} parent=1 // loop_body
      %s16 = ssub.s32 %s11, 1
      %s17 = ssub.s32 %s11, 2
      %s18 = sadd.s32 %s11, 1
      %s19 = ssub.s32 %s11, %s18
      %p20 = scmp.eq.s32.totalorder %s19, 0
      %s22 = sadd.s32 %s21, 1
      %s23 = scalar_select %p20, %s21, %s22
      %p26 = pneg %p20
      %p27 = scmp.eq.s32.totalorder %s11, 1
      %p28 = por %p26, %p27
      %p29 = scmp.ne.s32.totalorder %s21, %s24
      %p30 = scmp.eq.s32.totalorder %s11, 0
      %p31 = por %p29, %p30
      %p32 = scmp.ne.s32.totalorder %s21, %s24
      %p33 = scmp.eq.s32.totalorder %s16, 1
      %p34 = por %p32, %p33
      %p35 = scmp.ne.s32.totalorder %s24, %s25
      %p36 = scmp.eq.s32.totalorder %s16, 0
      %p37 = por %p35, %p36
      %p38 = scmp.ne.s32.totalorder %s24, %s25
      %p39 = scmp.eq.s32.totalorder %s17, 1
      %p40 = por %p38, %p39
      %p42 = scmp.ne.s32.totalorder %s25, %s41
      %p43 = scmp.eq.s32.totalorder %s17, 0
      %p44 = por %p42, %p43
      %s46 = sadd.s32 %s45, 1
      %p49 = scmp.eq.s32.totalorder %s11, 1
      %p50 = scmp.ne.s32.totalorder %s45, %s47
      %p51 = scmp.eq.s32.totalorder %s11, 0
      %p52 = por %p50, %p51
      %p53 = scmp.ne.s32.totalorder %s45, %s47
      %p54 = scmp.eq.s32.totalorder %s16, 1
      %p55 = por %p53, %p54
      %p56 = scmp.ne.s32.totalorder %s47, %s48
      %p57 = scmp.eq.s32.totalorder %s16, 0
      %p58 = por %p56, %p57
      %p59 = scmp.ne.s32.totalorder %s47, %s48
      %p60 = scmp.eq.s32.totalorder %s17, 1
      %p61 = por %p59, %p60
      %p63 = scmp.ne.s32.totalorder %s48, %s62
      %p64 = scmp.eq.s32.totalorder %s17, 0
      %p65 = por %p63, %p64
      %s67 = sadd.s32 %s66, 1
      %p70 = scmp.eq.s32.totalorder %s11, 1
      %p71 = scmp.ne.s32.totalorder %s66, %s68
      %p72 = scmp.eq.s32.totalorder %s11, 0
      %p73 = por %p71, %p72
      %p74 = scmp.ne.s32.totalorder %s66, %s68
      %p75 = scmp.eq.s32.totalorder %s16, 1
      %p76 = por %p74, %p75
      %p77 = scmp.ne.s32.totalorder %s68, %s69
      %p78 = scmp.eq.s32.totalorder %s16, 0
      %p79 = por %p77, %p78
      %p80 = scmp.ne.s32.totalorder %s68, %s69
      %p81 = scmp.eq.s32.totalorder %s17, 1
      %p82 = por %p80, %p81
      %p84 = scmp.ne.s32.totalorder %s69, %s83
      %p85 = scmp.eq.s32.totalorder %s17, 0
      %p86 = por %p84, %p85
      %s88 = sadd.s32 %s87, 1
      %p91 = scmp.eq.s32.totalorder %s11, 1
      %p92 = scmp.ne.s32.totalorder %s87, %s89
      %p93 = scmp.eq.s32.totalorder %s11, 0
      %p94 = por %p92, %p93
      %p95 = scmp.ne.s32.totalorder %s87, %s89
      %p96 = scmp.eq.s32.totalorder %s16, 1
      %p97 = por %p95, %p96
      %p98 = scmp.ne.s32.totalorder %s89, %s90
      %p99 = scmp.eq.s32.totalorder %s16, 0
      %p100 = por %p98, %p99
      %p101 = scmp.ne.s32.totalorder %s89, %s90
      %p102 = scmp.eq.s32.totalorder %s17, 1
      %p103 = por %p101, %p102
      %p105 = scmp.ne.s32.totalorder %s90, %s104
      %p106 = scmp.eq.s32.totalorder %s17, 0
      %p107 = por %p105, %p106
      %s109 = sadd.s32 %s108, 1
      %p112 = scmp.eq.s32.totalorder %s11, 1
      %p113 = scmp.ne.s32.totalorder %s108, %s110
      %p114 = scmp.eq.s32.totalorder %s11, 0
      %p115 = por %p113, %p114
      %p116 = scmp.ne.s32.totalorder %s108, %s110
      %p117 = scmp.eq.s32.totalorder %s16, 1
      %p118 = por %p116, %p117
      %p119 = scmp.ne.s32.totalorder %s110, %s111
      %p120 = scmp.eq.s32.totalorder %s16, 0
      %p121 = por %p119, %p120
      %p122 = scmp.ne.s32.totalorder %s110, %s111
      %p123 = scmp.eq.s32.totalorder %s17, 1
      %p124 = por %p122, %p123
      %p126 = scmp.ne.s32.totalorder %s111, %s125
      %p127 = scmp.eq.s32.totalorder %s17, 0
      %p128 = por %p126, %p127
      %s129 = ssub.s32 %s11, %s18
      %p130 = scmp.eq.s32.totalorder %s129, 0
      %s132 = sadd.s32 %s131, 1
      %s133 = scalar_select %p130, %s131, %s132
      %p136 = pneg %p130
      %p137 = scmp.eq.s32.totalorder %s11, 1
      %p138 = por %p136, %p137
      %p139 = scmp.ne.s32.totalorder %s131, %s134
      %p140 = scmp.eq.s32.totalorder %s11, 0
      %p141 = por %p139, %p140
      %p142 = scmp.ne.s32.totalorder %s131, %s134
      %p143 = scmp.eq.s32.totalorder %s16, 1
      %p144 = por %p142, %p143
      %p145 = scmp.ne.s32.totalorder %s134, %s135
      %p146 = scmp.eq.s32.totalorder %s16, 0
      %p147 = por %p145, %p146
      %p148 = scmp.ne.s32.totalorder %s134, %s135
      %p149 = scmp.eq.s32.totalorder %s17, 1
      %p150 = por %p148, %p149
      %p152 = scmp.ne.s32.totalorder %s135, %s151
      %p153 = scmp.eq.s32.totalorder %s17, 0
      %p154 = por %p152, %p153
      %p155 = scmp.le.s32.totalorder 1, %s11
      %p156 = scmp.lt.s32.totalorder %s11, 3
      %p157 = pnand %p155, %p156
      %p158 = pneg %p157
      // Predicated region
      $region9: #{tpu_custom_call.1} parent=5 // pred_check
        _
      $region10: #{tpu_custom_call.1} parent=5 // pred_check_branch
        %160 = sbr.rel (%p157) target = $region12
      $region11: #{tpu_custom_call.1} parent=5 // pred_region
        %s161 = ssub.s32 %s11, 1
        // Predicated region
        $region13: #{tpu_custom_call.1} parent=11 // pred_check
          %p162 = pneg %p58
        $region14: #{tpu_custom_call.1} parent=11 // pred_check_branch
          %164 = sbr.rel (%p162) target = $region16
        $region15: #{tpu_custom_call.1} parent=11 // pred_region
          _
        $region16: #{tpu_custom_call.1} parent=11 // pred_fallthru
          _
        // Predicated region
        $region17: #{tpu_custom_call.1} parent=11 // pred_check
          %p165 = pneg %p79
        $region18: #{tpu_custom_call.1} parent=11 // pred_check_branch
          %167 = sbr.rel (%p165) target = $region20
        $region19: #{tpu_custom_call.1} parent=11 // pred_region
          _
        $region20: #{tpu_custom_call.1} parent=11 // pred_fallthru
          _
        // Predicated region
        $region21: #{tpu_custom_call.1} parent=11 // pred_check
          %p168 = pneg %p100
        $region22: #{tpu_custom_call.1} parent=11 // pred_check_branch
          %170 = sbr.rel (%p168) target = $region24
        $region23: #{tpu_custom_call.1} parent=11 // pred_region
          _
        $region24: #{tpu_custom_call.1} parent=11 // pred_fallthru
          _
        // Predicated region
        $region25: #{tpu_custom_call.1} parent=11 // pred_check
          %p171 = pneg %p121
        $region26: #{tpu_custom_call.1} parent=11 // pred_check_branch
          %173 = sbr.rel (%p171) target = $region28
        $region27: #{tpu_custom_call.1} parent=11 // pred_region
          _
        $region28: #{tpu_custom_call.1} parent=11 // pred_fallthru
          _
      $region12: #{tpu_custom_call.1} parent=5 // pred_fallthru
        _
      %p174 = scmp.lt.s32.totalorder %s11, 2
      // Predicated region
      $region29: #{tpu_custom_call.1} parent=5 // pred_check
        %p175 = pneg %p174
      $region30: #{tpu_custom_call.1} parent=5 // pred_check_branch
        %177 = sbr.rel (%p175) target = $region32
      $region31: #{tpu_custom_call.1} parent=5 // pred_region
        // Predicated region
        $region33: #{tpu_custom_call.1} parent=31 // pred_check
          %p178 = pneg %p31
        $region34: #{tpu_custom_call.1} parent=31 // pred_check_branch
          %180 = sbr.rel (%p178) target = $region36
        $region35: #{tpu_custom_call.1} parent=31 // pred_region
          %s181 = smul.u32 32, %s11
          %s182 = ssub.s32 38, %s181
          %p183 = scmp.lt.s32.totalorder %s182, 32
          %s184 = scalar_select %p183, %s182, 32
          %s185 = smul.u32 128, %s184
          %p186 = scmp.lt.s32.totalorder %s181, 37
          %s187 = scalar_select %p186, %s181, 37
          %s188 = smul.addr %s187, 8
          %s189 = scalar_lea.vmem %s0, %s188
          %s190 = smul.u32 32, %s11
          %s191 = ssub.s32 38, %s190
          %p192 = scmp.lt.s32.totalorder %s191, 32
          %s193 = scalar_select %p192, %s191, 32
          %s194 = smul.u32 128, %s193
        $region36: #{tpu_custom_call.1} parent=31 // pred_fallthru
          _
      $region32: #{tpu_custom_call.1} parent=5 // pred_fallthru
        _
      %p195 = scmp.le.s32.totalorder 1, %s11
      %p196 = scmp.lt.s32.totalorder %s11, 3
      %p197 = pnand %p195, %p196
      %p198 = pneg %p197
      // Predicated region
      $region37: #{tpu_custom_call.1} parent=5 // pred_check
        _
      $region38: #{tpu_custom_call.1} parent=5 // pred_check_branch
        %200 = sbr.rel (%p197) target = $region40
      $region39: #{tpu_custom_call.1} parent=5 // pred_region
        %s201 = ssub.s32 %s11, 1
        %s202 = smul.u32 32, %s16
        %s203 = ssub.s32 38, %s202
        %p204 = scmp.lt.s32.totalorder %s203, 32
        %s205 = scalar_select %p204, %s203, 32
        %s206 = smul.u32 128, %s205
        %p207 = scmp.lt.s32.totalorder %s202, 37
        %s208 = scalar_select %p207, %s202, 37
        %s209 = smul.addr %s208, 8
        %s210 = scalar_lea.vmem %s0, %s209
        %p211 = pneg %p37
        %p212 = pneg %p34
        %p213 = pneg %p58
        %p214 = pneg %p55
        %p215 = pneg %p79
        %p216 = pneg %p76
        %p217 = pneg %p100
        %p218 = pneg %p97
        %p219 = pneg %p121
        %p220 = pneg %p118
        %p221 = pneg %p147
        %p222 = pneg %p144
        %s223 = sand.u32 %s134, 1
        %s224 = sand.u32 %s134, 1
        %s225 = smul.addr %s224, 256
        %s226 = scalar_lea.vmem [#allocation2], %s225
        %s227 = smul.u32 32, %s16
        %s228 = ssub.s32 38, %s227
        %p229 = scmp.lt.s32.totalorder %s228, 32
        %s230 = scalar_select %p229, %s228, 32
        %s231 = smul.u32 128, %s230
        %p232 = scmp.lt.s32.totalorder %s227, 37
        %s233 = scalar_select %p232, %s227, 37
        %s234 = smul.addr %s233, 8
        %s235 = scalar_lea.vmem %s0, %s234
        %s236 = smul.u32 32, %s16
        %s237 = ssub.s32 38, %s236
        %p238 = scmp.lt.s32.totalorder %s237, 32
        %s239 = scalar_select %p238, %s237, 32
        %s240 = smul.u32 128, %s239
        %s241 = smul.u32 32, %s16
        %s242 = ssub.s32 38, %s241
        %p243 = scmp.lt.s32.totalorder %s242, 32
        %s244 = scalar_select %p243, %s242, 32
        %s245 = smul.u32 128, %s244
        %v246 = vld [vmem:[%s235] sm:$0xff]
        %v247 = vld [vmem:[%s235 + $0x8] sm:$0xff]
        %v248 = vld [vmem:[%s235 + $0x10] sm:$0xff]
        %v249 = vld [vmem:[%s235 + $0x18] sm:$0xff]
        %v250 = vld [vmem:[%s235 + $0x20] sm:$0xff]
        %v251 = vld [vmem:[%s235 + $0x28] sm:$0xff]
        %v252 = vld [vmem:[%s235 + $0x30] sm:$0xff]
        %v253 = vld [vmem:[%s235 + $0x38] sm:$0xff]
        %v254 = vld [vmem:[%s235 + $0x40] sm:$0xff]
        %v255 = vld [vmem:[%s235 + $0x48] sm:$0xff]
        %v256 = vld [vmem:[%s235 + $0x50] sm:$0xff]
        %v257 = vld [vmem:[%s235 + $0x58] sm:$0xff]
        %v258 = vld [vmem:[%s235 + $0x60] sm:$0xff]
        %v259 = vld [vmem:[%s235 + $0x68] sm:$0xff]
        %v260 = vld [vmem:[%s235 + $0x70] sm:$0xff]
        %v261 = vld [vmem:[%s235 + $0x78] sm:$0xff]
        %v262 = vld [vmem:[%s235 + $0x80] sm:$0xff]
        %v263 = vld [vmem:[%s235 + $0x88] sm:$0xff]
        %v264 = vld [vmem:[%s235 + $0x90] sm:$0xff]
        %v265 = vld [vmem:[%s235 + $0x98] sm:$0xff]
        %v266 = vld [vmem:[%s235 + $0xa0] sm:$0xff]
        %v267 = vld [vmem:[%s235 + $0xa8] sm:$0xff]
        %v268 = vld [vmem:[%s235 + $0xb0] sm:$0xff]
        %v269 = vld [vmem:[%s235 + $0xb8] sm:$0xff]
        %v270 = vld [vmem:[%s235 + $0xc0] sm:$0xff]
        %v271 = vld [vmem:[%s235 + $0xc8] sm:$0xff]
        %v272 = vld [vmem:[%s235 + $0xd0] sm:$0xff]
        %v273 = vld [vmem:[%s235 + $0xd8] sm:$0xff]
        %v274 = vld [vmem:[%s235 + $0xe0] sm:$0xff]
        %v275 = vld [vmem:[%s235 + $0xe8] sm:$0xff]
        %v276 = vld [vmem:[%s235 + $0xf0] sm:$0xff]
        %v277 = vld [vmem:[%s235 + $0xf8] sm:$0xff]
        %v278 = vld [vmem:[%s1] sm:$0xff]
        %v279 = vld [vmem:[%s1 + $0x8] sm:$0xff]
        %v280 = vld [vmem:[%s1 + $0x10] sm:$0xff]
        %v281 = vld [vmem:[%s1 + $0x18] sm:$0xff]
        %v282 = vld [vmem:[%s2] sm:$0x1]
        %v284 = vlaneseq
        %v285 = vshrl.u32 %v284, 7
        %v286 = vsub.s32 0, %v285
        %v287 = vrot.slane %v282, %v286
        %vm289 = vcmask 261120
        %v291 = vsel %vm289, %v246, 0
        %v294 = vsel %vm289, %v247, 0
        %v297 = vsel %vm289, %v248, 0
        %v300 = vsel %vm289, %v249, 0
        %v303 = vsel %vm289, %v250, 0
        %v306 = vsel %vm289, %v251, 0
        %v309 = vsel %vm289, %v252, 0
        %v312 = vsel %vm289, %v253, 0
        %v315 = vsel %vm289, %v254, 0
        %v318 = vsel %vm289, %v255, 0
        %v321 = vsel %vm289, %v256, 0
        %v324 = vsel %vm289, %v257, 0
        %v327 = vsel %vm289, %v258, 0
        %v330 = vsel %vm289, %v259, 0
        %v333 = vsel %vm289, %v260, 0
        %v336 = vsel %vm289, %v261, 0
        %v339 = vsel %vm289, %v262, 0
        %v342 = vsel %vm289, %v263, 0
        %v345 = vsel %vm289, %v264, 0
        %v348 = vsel %vm289, %v265, 0
        %v351 = vsel %vm289, %v266, 0
        %v354 = vsel %vm289, %v267, 0
        %v357 = vsel %vm289, %v268, 0
        %v360 = vsel %vm289, %v269, 0
        %v363 = vsel %vm289, %v270, 0
        %v366 = vsel %vm289, %v271, 0
        %v369 = vsel %vm289, %v272, 0
        %v372 = vsel %vm289, %v273, 0
        %v375 = vsel %vm289, %v274, 0
        %v378 = vsel %vm289, %v275, 0
        %v381 = vsel %vm289, %v276, 0
        %v384 = vsel %vm289, %v277, 0
        %386 = vmatprep.subr.mxu0 0.0
        %387 = vmatpush1.msra.mxu0 %v278
        %388 = vmatprep.subr.mxu0 0.0
        %389 = vmatpush1.msra.mxu0 %v279
        %390 = vmatprep.subr.mxu0 0.0
        %391 = vmatpush1.msra.mxu0 %v280
        %392 = vmatprep.subr.mxu0 0.0
        %393 = vmatpush1.msra.mxu0 %v281
        %394 = vmatprep.subr.mxu0 0.0
        %395 = vmatpush1.msra.mxu0 0.0
        %396 = vmatprep.subr.mxu0 0.0
        %397 = vmatpush1.msra.mxu0 0.0
        %398 = vmatprep.subr.mxu0 0.0
        %399 = vmatpush1.msra.mxu0 0.0
        %400 = vmatprep.subr.mxu0 0.0
        %401 = vmatpush1.msra.mxu0 0.0
        %402 = vmatprep.subr.mxu0 0.0
        %403 = vmatpush1.msra.mxu0 0.0
        %404 = vmatprep.subr.mxu0 0.0
        %405 = vmatpush1.msra.mxu0 0.0
        %406 = vmatprep.subr.mxu0 0.0
        %407 = vmatpush1.msra.mxu0 0.0
        %408 = vmatprep.subr.mxu0 0.0
        %409 = vmatpush1.msra.mxu0 0.0
        %410 = vmatprep.subr.mxu0 0.0
        %411 = vmatpush1.msra.mxu0 0.0
        %412 = vmatprep.subr.mxu0 0.0
        %413 = vmatpush1.msra.mxu0 0.0
        %414 = vmatprep.subr.mxu0 0.0
        %415 = vmatpush1.msra.mxu0 0.0
        %416 = vmatprep.subr.mxu0 0.0
        %417 = vmatpush1.msra.mxu0 0.0
        %418 = vmatprep.subr.mxu0 0.0
        %419 = vmatpush1.msra.mxu0 0.0
        %420 = vmatprep.subr.mxu0 0.0
        %421 = vmatpush1.msra.mxu0 0.0
        %422 = vmatprep.subr.mxu0 0.0
        %423 = vmatpush1.msra.mxu0 0.0
        %424 = vmatprep.subr.mxu0 0.0
        %425 = vmatpush1.msra.mxu0 0.0
        %426 = vmatprep.subr.mxu0 0.0
        %427 = vmatpush1.msra.mxu0 0.0
        %428 = vmatprep.subr.mxu0 0.0
        %429 = vmatpush1.msra.mxu0 0.0
        %430 = vmatprep.subr.mxu0 0.0
        %431 = vmatpush1.msra.mxu0 0.0
        %432 = vmatprep.subr.mxu0 0.0
        %433 = vmatpush1.msra.mxu0 0.0
        %434 = vmatprep.subr.mxu0 0.0
        %435 = vmatpush1.msra.mxu0 0.0
        %436 = vmatprep.subr.mxu0 0.0
        %437 = vmatpush1.msra.mxu0 0.0
        %438 = vmatprep.subr.mxu0 0.0
        %439 = vmatpush1.msra.mxu0 0.0
        %440 = vmatprep.subr.mxu0 0.0
        %441 = vmatpush1.msra.mxu0 0.0
        %442 = vmatprep.subr.mxu0 0.0
        %443 = vmatpush1.msra.mxu0 0.0
        %444 = vmatprep.subr.mxu0 0.0
        %445 = vmatpush1.msra.mxu0 0.0
        %446 = vmatprep.subr.mxu0 0.0
        %447 = vmatpush1.msra.mxu0 0.0
        %448 = vmatprep.subr.mxu0 0.0
        %449 = vmatpush1.msra.mxu0 0.0
        %450 = vmatprep.mubr.f32.mxu0 0.0
        %451 = vmatmul.mubr.f32.gmra.mrb[0].mxu0 %v291
        %v452 = vpop.f32.mrb[0].mxu0
        %v453 = vadd.f32 %v287, %v452
        %v454 = vpop.f32.mrb[0].mxu0
        %455 = vmatprep.mubr.f32.mxu0 0.0
        %456 = vmatmul.mubr.f32.gmra.mrb[0].mxu0 %v294
        %v457 = vpop.f32.mrb[0].mxu0
        %v458 = vadd.f32 %v287, %v457
        %v459 = vpop.f32.mrb[0].mxu0
        %460 = vmatprep.mubr.f32.mxu0 0.0
        %461 = vmatmul.mubr.f32.gmra.mrb[0].mxu0 %v297
        %v462 = vpop.f32.mrb[0].mxu0
        %v463 = vadd.f32 %v287, %v462
        %v464 = vpop.f32.mrb[0].mxu0
        %465 = vmatprep.mubr.f32.mxu0 0.0
        %466 = vmatmul.mubr.f32.gmra.mrb[0].mxu0 %v300
        %v467 = vpop.f32.mrb[0].mxu0
        %v468 = vadd.f32 %v287, %v467
        %v469 = vpop.f32.mrb[0].mxu0
        %470 = vmatprep.mubr.f32.mxu0 0.0
        %471 = vmatmul.mubr.f32.gmra.mrb[0].mxu0 %v303
        %v472 = vpop.f32.mrb[0].mxu0
        %v473 = vadd.f32 %v287, %v472
        %v474 = vpop.f32.mrb[0].mxu0
        %475 = vmatprep.mubr.f32.mxu0 0.0
        %476 = vmatmul.mubr.f32.gmra.mrb[0].mxu0 %v306
        %v477 = vpop.f32.mrb[0].mxu0
        %v478 = vadd.f32 %v287, %v477
        %v479 = vpop.f32.mrb[0].mxu0
        %480 = vmatprep.mubr.f32.mxu0 0.0
        %481 = vmatmul.mubr.f32.gmra.mrb[0].mxu0 %v309
        %v482 = vpop.f32.mrb[0].mxu0
        %v483 = vadd.f32 %v287, %v482
        %v484 = vpop.f32.mrb[0].mxu0
        %485 = vmatprep.mubr.f32.mxu0 0.0
        %486 = vmatmul.mubr.f32.gmra.mrb[0].mxu0 %v312
        %v487 = vpop.f32.mrb[0].mxu0
        %v488 = vadd.f32 %v287, %v487
        %v489 = vpop.f32.mrb[0].mxu0
        %490 = vmatprep.mubr.f32.mxu0 0.0
        %491 = vmatmul.mubr.f32.gmra.mrb[0].mxu0 %v315
        %v492 = vpop.f32.mrb[0].mxu0
        %v493 = vadd.f32 %v287, %v492
        %v494 = vpop.f32.mrb[0].mxu0
        %495 = vmatprep.mubr.f32.mxu0 0.0
        %496 = vmatmul.mubr.f32.gmra.mrb[0].mxu0 %v318
        %v497 = vpop.f32.mrb[0].mxu0
        %v498 = vadd.f32 %v287, %v497
        %v499 = vpop.f32.mrb[0].mxu0
        %500 = vmatprep.mubr.f32.mxu0 0.0
        %501 = vmatmul.mubr.f32.gmra.mrb[0].mxu0 %v321
        %v502 = vpop.f32.mrb[0].mxu0
        %v503 = vadd.f32 %v287, %v502
        %v504 = vpop.f32.mrb[0].mxu0
        %505 = vmatprep.mubr.f32.mxu0 0.0
        %506 = vmatmul.mubr.f32.gmra.mrb[0].mxu0 %v324
        %v507 = vpop.f32.mrb[0].mxu0
        %v508 = vadd.f32 %v287, %v507
        %v509 = vpop.f32.mrb[0].mxu0
        %510 = vmatprep.mubr.f32.mxu0 0.0
        %511 = vmatmul.mubr.f32.gmra.mrb[0].mxu0 %v327
        %v512 = vpop.f32.mrb[0].mxu0
        %v513 = vadd.f32 %v287, %v512
        %v514 = vpop.f32.mrb[0].mxu0
        %515 = vmatprep.mubr.f32.mxu0 0.0
        %516 = vmatmul.mubr.f32.gmra.mrb[0].mxu0 %v330
        %v517 = vpop.f32.mrb[0].mxu0
        %v518 = vadd.f32 %v287, %v517
        %v519 = vpop.f32.mrb[0].mxu0
        %520 = vmatprep.mubr.f32.mxu0 0.0
        %521 = vmatmul.mubr.f32.gmra.mrb[0].mxu0 %v333
        %v522 = vpop.f32.mrb[0].mxu0
        %v523 = vadd.f32 %v287, %v522
        %v524 = vpop.f32.mrb[0].mxu0
        %525 = vmatprep.mubr.f32.mxu0 0.0
        %526 = vmatmul.mubr.f32.gmra.mrb[0].mxu0 %v336
        %v527 = vpop.f32.mrb[0].mxu0
        %v528 = vadd.f32 %v287, %v527
        %v529 = vpop.f32.mrb[0].mxu0
        %530 = vmatprep.mubr.f32.mxu0 0.0
        %531 = vmatmul.mubr.f32.gmra.mrb[0].mxu0 %v339
        %v532 = vpop.f32.mrb[0].mxu0
        %v533 = vadd.f32 %v287, %v532
        %v534 = vpop.f32.mrb[0].mxu0
        %535 = vmatprep.mubr.f32.mxu0 0.0
        %536 = vmatmul.mubr.f32.gmra.mrb[0].mxu0 %v342
        %v537 = vpop.f32.mrb[0].mxu0
        %v538 = vadd.f32 %v287, %v537
        %v539 = vpop.f32.mrb[0].mxu0
        %540 = vmatprep.mubr.f32.mxu0 0.0
        %541 = vmatmul.mubr.f32.gmra.mrb[0].mxu0 %v345
        %v542 = vpop.f32.mrb[0].mxu0
        %v543 = vadd.f32 %v287, %v542
        %v544 = vpop.f32.mrb[0].mxu0
        %545 = vmatprep.mubr.f32.mxu0 0.0
        %546 = vmatmul.mubr.f32.gmra.mrb[0].mxu0 %v348
        %v547 = vpop.f32.mrb[0].mxu0
        %v548 = vadd.f32 %v287, %v547
        %v549 = vpop.f32.mrb[0].mxu0
        %550 = vmatprep.mubr.f32.mxu0 0.0
        %551 = vmatmul.mubr.f32.gmra.mrb[0].mxu0 %v351
        %v552 = vpop.f32.mrb[0].mxu0
        %v553 = vadd.f32 %v287, %v552
        %v554 = vpop.f32.mrb[0].mxu0
        %555 = vmatprep.mubr.f32.mxu0 0.0
        %556 = vmatmul.mubr.f32.gmra.mrb[0].mxu0 %v354
        %v557 = vpop.f32.mrb[0].mxu0
        %v558 = vadd.f32 %v287, %v557
        %v559 = vpop.f32.mrb[0].mxu0
        %560 = vmatprep.mubr.f32.mxu0 0.0
        %561 = vmatmul.mubr.f32.gmra.mrb[0].mxu0 %v357
        %v562 = vpop.f32.mrb[0].mxu0
        %v563 = vadd.f32 %v287, %v562
        %v564 = vpop.f32.mrb[0].mxu0
        %565 = vmatprep.mubr.f32.mxu0 0.0
        %566 = vmatmul.mubr.f32.gmra.mrb[0].mxu0 %v360
        %v567 = vpop.f32.mrb[0].mxu0
        %v568 = vadd.f32 %v287, %v567
        %v569 = vpop.f32.mrb[0].mxu0
        %570 = vmatprep.mubr.f32.mxu0 0.0
        %571 = vmatmul.mubr.f32.gmra.mrb[0].mxu0 %v363
        %v572 = vpop.f32.mrb[0].mxu0
        %v573 = vadd.f32 %v287, %v572
        %v574 = vpop.f32.mrb[0].mxu0
        %575 = vmatprep.mubr.f32.mxu0 0.0
        %576 = vmatmul.mubr.f32.gmra.mrb[0].mxu0 %v366
        %v577 = vpop.f32.mrb[0].mxu0
        %v578 = vadd.f32 %v287, %v577
        %v579 = vpop.f32.mrb[0].mxu0
        %580 = vmatprep.mubr.f32.mxu0 0.0
        %581 = vmatmul.mubr.f32.gmra.mrb[0].mxu0 %v369
        %v582 = vpop.f32.mrb[0].mxu0
        %v583 = vadd.f32 %v287, %v582
        %v584 = vpop.f32.mrb[0].mxu0
        %585 = vmatprep.mubr.f32.mxu0 0.0
        %586 = vmatmul.mubr.f32.gmra.mrb[0].mxu0 %v372
        %v587 = vpop.f32.mrb[0].mxu0
        %v588 = vadd.f32 %v287, %v587
        %v589 = vpop.f32.mrb[0].mxu0
        %590 = vmatprep.mubr.f32.mxu0 0.0
        %591 = vmatmul.mubr.f32.gmra.mrb[0].mxu0 %v375
        %v592 = vpop.f32.mrb[0].mxu0
        %v593 = vadd.f32 %v287, %v592
        %v594 = vpop.f32.mrb[0].mxu0
        %595 = vmatprep.mubr.f32.mxu0 0.0
        %596 = vmatmul.mubr.f32.gmra.mrb[0].mxu0 %v378
        %v597 = vpop.f32.mrb[0].mxu0
        %v598 = vadd.f32 %v287, %v597
        %v599 = vpop.f32.mrb[0].mxu0
        %600 = vmatprep.mubr.f32.mxu0 0.0
        %601 = vmatmul.mubr.f32.gmra.mrb[0].mxu0 %v381
        %v602 = vpop.f32.mrb[0].mxu0
        %v603 = vadd.f32 %v287, %v602
        %v604 = vpop.f32.mrb[0].mxu0
        %605 = vmatprep.mubr.f32.mxu0 0.0
        %606 = vmatmul.mubr.f32.gmra.mrb[0].mxu0 %v384
        %v607 = vpop.f32.mrb[0].mxu0
        %v608 = vadd.f32 %v287, %v607
        %v609 = vpop.f32.mrb[0].mxu0
        %610 = vdwg.mxu0
        %v611 = vmax.f32 %v453, 0.0
        %v612 = vmax.f32 %v458, 0.0
        %v613 = vmax.f32 %v463, 0.0
        %v614 = vmax.f32 %v468, 0.0
        %v615 = vmax.f32 %v473, 0.0
        %v616 = vmax.f32 %v478, 0.0
        %v617 = vmax.f32 %v483, 0.0
        %v618 = vmax.f32 %v488, 0.0
        %v619 = vmax.f32 %v493, 0.0
        %v620 = vmax.f32 %v498, 0.0
        %v621 = vmax.f32 %v503, 0.0
        %v622 = vmax.f32 %v508, 0.0
        %v623 = vmax.f32 %v513, 0.0
        %v624 = vmax.f32 %v518, 0.0
        %v625 = vmax.f32 %v523, 0.0
        %v626 = vmax.f32 %v528, 0.0
        %v627 = vmax.f32 %v533, 0.0
        %v628 = vmax.f32 %v538, 0.0
        %v629 = vmax.f32 %v543, 0.0
        %v630 = vmax.f32 %v548, 0.0
        %v631 = vmax.f32 %v553, 0.0
        %v632 = vmax.f32 %v558, 0.0
        %v633 = vmax.f32 %v563, 0.0
        %v634 = vmax.f32 %v568, 0.0
        %v635 = vmax.f32 %v573, 0.0
        %v636 = vmax.f32 %v578, 0.0
        %v637 = vmax.f32 %v583, 0.0
        %v638 = vmax.f32 %v588, 0.0
        %v639 = vmax.f32 %v593, 0.0
        %v640 = vmax.f32 %v598, 0.0
        %v641 = vmax.f32 %v603, 0.0
        %v642 = vmax.f32 %v608, 0.0
        %v643 = vld [vmem:[%s3] sm:$0xff]
        %v644 = vld [vmem:[%s3 + $0x8] sm:$0xff]
        %v645 = vld [vmem:[%s3 + $0x10] sm:$0xff]
        %v646 = vld [vmem:[%s3 + $0x18] sm:$0xff]
        %v647 = vld [vmem:[%s3 + $0x20] sm:$0xff]
        %v648 = vld [vmem:[%s3 + $0x28] sm:$0xff]
        %v649 = vld [vmem:[%s3 + $0x30] sm:$0xff]
        %v650 = vld [vmem:[%s3 + $0x38] sm:$0xff]
        %v651 = vld [vmem:[%s3 + $0x40] sm:$0xff]
        %v652 = vld [vmem:[%s3 + $0x48] sm:$0xff]
        %v653 = vld [vmem:[%s3 + $0x50] sm:$0xff]
        %v654 = vld [vmem:[%s3 + $0x58] sm:$0xff]
        %v655 = vld [vmem:[%s3 + $0x60] sm:$0xff]
        %v656 = vld [vmem:[%s3 + $0x68] sm:$0xff]
        %v657 = vld [vmem:[%s3 + $0x70] sm:$0xff]
        %v658 = vld [vmem:[%s3 + $0x78] sm:$0xff]
        %v659 = vld [vmem:[%s4] sm:$0x1]
        %v661 = vlaneseq
        %v662 = vshrl.u32 %v661, 7
        %v663 = vsub.s32 0, %v662
        %v664 = vrot.slane %v659, %v663
        %666 = vmatprep.subr.mxu0 0.0
        %667 = vmatpush1.msra.mxu0 %v643
        %668 = vmatprep.subr.mxu0 0.0
        %669 = vmatpush1.msra.mxu0 %v644
        %670 = vmatprep.subr.mxu0 0.0
        %671 = vmatpush1.msra.mxu0 %v645
        %672 = vmatprep.subr.mxu0 0.0
        %673 = vmatpush1.msra.mxu0 %v646
        %674 = vmatprep.subr.mxu0 0.0
        %675 = vmatpush1.msra.mxu0 %v647
        %676 = vmatprep.subr.mxu0 0.0
        %677 = vmatpush1.msra.mxu0 %v648
        %678 = vmatprep.subr.mxu0 0.0
        %679 = vmatpush1.msra.mxu0 %v649
        %680 = vmatprep.subr.mxu0 0.0
        %681 = vmatpush1.msra.mxu0 %v650
        %682 = vmatprep.subr.mxu0 0.0
        %683 = vmatpush1.msra.mxu0 %v651
        %684 = vmatprep.subr.mxu0 0.0
        %685 = vmatpush1.msra.mxu0 %v652
        %686 = vmatprep.subr.mxu0 0.0
        %687 = vmatpush1.msra.mxu0 %v653
        %688 = vmatprep.subr.mxu0 0.0
        %689 = vmatpush1.msra.mxu0 %v654
        %690 = vmatprep.subr.mxu0 0.0
        %691 = vmatpush1.msra.mxu0 %v655
        %692 = vmatprep.subr.mxu0 0.0
        %693 = vmatpush1.msra.mxu0 %v656
        %694 = vmatprep.subr.mxu0 0.0
        %695 = vmatpush1.msra.mxu0 %v657
        %696 = vmatprep.subr.mxu0 0.0
        %697 = vmatpush1.msra.mxu0 %v658
        %698 = vmatprep.subr.mxu0 0.0
        %699 = vmatpush1.msra.mxu0 0.0
        %700 = vmatprep.subr.mxu0 0.0
        %701 = vmatpush1.msra.mxu0 0.0
        %702 = vmatprep.subr.mxu0 0.0
        %703 = vmatpush1.msra.mxu0 0.0
        %704 = vmatprep.subr.mxu0 0.0
        %705 = vmatpush1.msra.mxu0 0.0
        %706 = vmatprep.subr.mxu0 0.0
        %707 = vmatpush1.msra.mxu0 0.0
        %708 = vmatprep.subr.mxu0 0.0
        %709 = vmatpush1.msra.mxu0 0.0
        %710 = vmatprep.subr.mxu0 0.0
        %711 = vmatpush1.msra.mxu0 0.0
        %712 = vmatprep.subr.mxu0 0.0
        %713 = vmatpush1.msra.mxu0 0.0
        %714 = vmatprep.subr.mxu0 0.0
        %715 = vmatpush1.msra.mxu0 0.0
        %716 = vmatprep.subr.mxu0 0.0
        %717 = vmatpush1.msra.mxu0 0.0
        %718 = vmatprep.subr.mxu0 0.0
        %719 = vmatpush1.msra.mxu0 0.0
        %720 = vmatprep.subr.mxu0 0.0
        %721 = vmatpush1.msra.mxu0 0.0
        %722 = vmatprep.subr.mxu0 0.0
        %723 = vmatpush1.msra.mxu0 0.0
        %724 = vmatprep.subr.mxu0 0.0
        %725 = vmatpush1.msra.mxu0 0.0
        %726 = vmatprep.subr.mxu0 0.0
        %727 = vmatpush1.msra.mxu0 0.0
        %728 = vmatprep.subr.mxu0 0.0
        %729 = vmatpush1.msra.mxu0 0.0
        %730 = vmatprep.mubr.f32.mxu0 0.0
        %731 = vmatmul.mubr.f32.gmra.mrb[0].mxu0 %v611
        %v732 = vpop.f32.mrb[0].mxu0
        %v733 = vadd.f32 %v664, %v732
        %v734 = vpop.f32.mrb[0].mxu0
        %735 = vmatprep.mubr.f32.mxu0 0.0
        %736 = vmatmul.mubr.f32.gmra.mrb[0].mxu0 %v612
        %v737 = vpop.f32.mrb[0].mxu0
        %v738 = vadd.f32 %v664, %v737
        %v739 = vpop.f32.mrb[0].mxu0
        %740 = vmatprep.mubr.f32.mxu0 0.0
        %741 = vmatmul.mubr.f32.gmra.mrb[0].mxu0 %v613
        %v742 = vpop.f32.mrb[0].mxu0
        %v743 = vadd.f32 %v664, %v742
        %v744 = vpop.f32.mrb[0].mxu0
        %745 = vmatprep.mubr.f32.mxu0 0.0
        %746 = vmatmul.mubr.f32.gmra.mrb[0].mxu0 %v614
        %v747 = vpop.f32.mrb[0].mxu0
        %v748 = vadd.f32 %v664, %v747
        %v749 = vpop.f32.mrb[0].mxu0
        %750 = vmatprep.mubr.f32.mxu0 0.0
        %751 = vmatmul.mubr.f32.gmra.mrb[0].mxu0 %v615
        %v752 = vpop.f32.mrb[0].mxu0
        %v753 = vadd.f32 %v664, %v752
        %v754 = vpop.f32.mrb[0].mxu0
        %755 = vmatprep.mubr.f32.mxu0 0.0
        %756 = vmatmul.mubr.f32.gmra.mrb[0].mxu0 %v616
        %v757 = vpop.f32.mrb[0].mxu0
        %v758 = vadd.f32 %v664, %v757
        %v759 = vpop.f32.mrb[0].mxu0
        %760 = vmatprep.mubr.f32.mxu0 0.0
        %761 = vmatmul.mubr.f32.gmra.mrb[0].mxu0 %v617
        %v762 = vpop.f32.mrb[0].mxu0
        %v763 = vadd.f32 %v664, %v762
        %v764 = vpop.f32.mrb[0].mxu0
        %765 = vmatprep.mubr.f32.mxu0 0.0
        %766 = vmatmul.mubr.f32.gmra.mrb[0].mxu0 %v618
        %v767 = vpop.f32.mrb[0].mxu0
        %v768 = vadd.f32 %v664, %v767
        %v769 = vpop.f32.mrb[0].mxu0
        %770 = vmatprep.mubr.f32.mxu0 0.0
        %771 = vmatmul.mubr.f32.gmra.mrb[0].mxu0 %v619
        %v772 = vpop.f32.mrb[0].mxu0
        %v773 = vadd.f32 %v664, %v772
        %v774 = vpop.f32.mrb[0].mxu0
        %775 = vmatprep.mubr.f32.mxu0 0.0
        %776 = vmatmul.mubr.f32.gmra.mrb[0].mxu0 %v620
        %v777 = vpop.f32.mrb[0].mxu0
        %v778 = vadd.f32 %v664, %v777
        %v779 = vpop.f32.mrb[0].mxu0
        %780 = vmatprep.mubr.f32.mxu0 0.0
        %781 = vmatmul.mubr.f32.gmra.mrb[0].mxu0 %v621
        %v782 = vpop.f32.mrb[0].mxu0
        %v783 = vadd.f32 %v664, %v782
        %v784 = vpop.f32.mrb[0].mxu0
        %785 = vmatprep.mubr.f32.mxu0 0.0
        %786 = vmatmul.mubr.f32.gmra.mrb[0].mxu0 %v622
        %v787 = vpop.f32.mrb[0].mxu0
        %v788 = vadd.f32 %v664, %v787
        %v789 = vpop.f32.mrb[0].mxu0
        %790 = vmatprep.mubr.f32.mxu0 0.0
        %791 = vmatmul.mubr.f32.gmra.mrb[0].mxu0 %v623
        %v792 = vpop.f32.mrb[0].mxu0
        %v793 = vadd.f32 %v664, %v792
        %v794 = vpop.f32.mrb[0].mxu0
        %795 = vmatprep.mubr.f32.mxu0 0.0
        %796 = vmatmul.mubr.f32.gmra.mrb[0].mxu0 %v624
        %v797 = vpop.f32.mrb[0].mxu0
        %v798 = vadd.f32 %v664, %v797
        %v799 = vpop.f32.mrb[0].mxu0
        %800 = vmatprep.mubr.f32.mxu0 0.0
        %801 = vmatmul.mubr.f32.gmra.mrb[0].mxu0 %v625
        %v802 = vpop.f32.mrb[0].mxu0
        %v803 = vadd.f32 %v664, %v802
        %v804 = vpop.f32.mrb[0].mxu0
        %805 = vmatprep.mubr.f32.mxu0 0.0
        %806 = vmatmul.mubr.f32.gmra.mrb[0].mxu0 %v626
        %v807 = vpop.f32.mrb[0].mxu0
        %v808 = vadd.f32 %v664, %v807
        %v809 = vpop.f32.mrb[0].mxu0
        %810 = vmatprep.mubr.f32.mxu0 0.0
        %811 = vmatmul.mubr.f32.gmra.mrb[0].mxu0 %v627
        %v812 = vpop.f32.mrb[0].mxu0
        %v813 = vadd.f32 %v664, %v812
        %v814 = vpop.f32.mrb[0].mxu0
        %815 = vmatprep.mubr.f32.mxu0 0.0
        %816 = vmatmul.mubr.f32.gmra.mrb[0].mxu0 %v628
        %v817 = vpop.f32.mrb[0].mxu0
        %v818 = vadd.f32 %v664, %v817
        %v819 = vpop.f32.mrb[0].mxu0
        %820 = vmatprep.mubr.f32.mxu0 0.0
        %821 = vmatmul.mubr.f32.gmra.mrb[0].mxu0 %v629
        %v822 = vpop.f32.mrb[0].mxu0
        %v823 = vadd.f32 %v664, %v822
        %v824 = vpop.f32.mrb[0].mxu0
        %825 = vmatprep.mubr.f32.mxu0 0.0
        %826 = vmatmul.mubr.f32.gmra.mrb[0].mxu0 %v630
        %v827 = vpop.f32.mrb[0].mxu0
        %v828 = vadd.f32 %v664, %v827
        %v829 = vpop.f32.mrb[0].mxu0
        %830 = vmatprep.mubr.f32.mxu0 0.0
        %831 = vmatmul.mubr.f32.gmra.mrb[0].mxu0 %v631
        %v832 = vpop.f32.mrb[0].mxu0
        %v833 = vadd.f32 %v664, %v832
        %v834 = vpop.f32.mrb[0].mxu0
        %835 = vmatprep.mubr.f32.mxu0 0.0
        %836 = vmatmul.mubr.f32.gmra.mrb[0].mxu0 %v632
        %v837 = vpop.f32.mrb[0].mxu0
        %v838 = vadd.f32 %v664, %v837
        %v839 = vpop.f32.mrb[0].mxu0
        %840 = vmatprep.mubr.f32.mxu0 0.0
        %841 = vmatmul.mubr.f32.gmra.mrb[0].mxu0 %v633
        %v842 = vpop.f32.mrb[0].mxu0
        %v843 = vadd.f32 %v664, %v842
        %v844 = vpop.f32.mrb[0].mxu0
        %845 = vmatprep.mubr.f32.mxu0 0.0
        %846 = vmatmul.mubr.f32.gmra.mrb[0].mxu0 %v634
        %v847 = vpop.f32.mrb[0].mxu0
        %v848 = vadd.f32 %v664, %v847
        %v849 = vpop.f32.mrb[0].mxu0
        %850 = vmatprep.mubr.f32.mxu0 0.0
        %851 = vmatmul.mubr.f32.gmra.mrb[0].mxu0 %v635
        %v852 = vpop.f32.mrb[0].mxu0
        %v853 = vadd.f32 %v664, %v852
        %v854 = vpop.f32.mrb[0].mxu0
        %855 = vmatprep.mubr.f32.mxu0 0.0
        %856 = vmatmul.mubr.f32.gmra.mrb[0].mxu0 %v636
        %v857 = vpop.f32.mrb[0].mxu0
        %v858 = vadd.f32 %v664, %v857
        %v859 = vpop.f32.mrb[0].mxu0
        %860 = vmatprep.mubr.f32.mxu0 0.0
        %861 = vmatmul.mubr.f32.gmra.mrb[0].mxu0 %v637
        %v862 = vpop.f32.mrb[0].mxu0
        %v863 = vadd.f32 %v664, %v862
        %v864 = vpop.f32.mrb[0].mxu0
        %865 = vmatprep.mubr.f32.mxu0 0.0
        %866 = vmatmul.mubr.f32.gmra.mrb[0].mxu0 %v638
        %v867 = vpop.f32.mrb[0].mxu0
        %v868 = vadd.f32 %v664, %v867
        %v869 = vpop.f32.mrb[0].mxu0
        %870 = vmatprep.mubr.f32.mxu0 0.0
        %871 = vmatmul.mubr.f32.gmra.mrb[0].mxu0 %v639
        %v872 = vpop.f32.mrb[0].mxu0
        %v873 = vadd.f32 %v664, %v872
        %v874 = vpop.f32.mrb[0].mxu0
        %875 = vmatprep.mubr.f32.mxu0 0.0
        %876 = vmatmul.mubr.f32.gmra.mrb[0].mxu0 %v640
        %v877 = vpop.f32.mrb[0].mxu0
        %v878 = vadd.f32 %v664, %v877
        %v879 = vpop.f32.mrb[0].mxu0
        %880 = vmatprep.mubr.f32.mxu0 0.0
        %881 = vmatmul.mubr.f32.gmra.mrb[0].mxu0 %v641
        %v882 = vpop.f32.mrb[0].mxu0
        %v883 = vadd.f32 %v664, %v882
        %v884 = vpop.f32.mrb[0].mxu0
        %885 = vmatprep.mubr.f32.mxu0 0.0
        %886 = vmatmul.mubr.f32.gmra.mrb[0].mxu0 %v642
        %v887 = vpop.f32.mrb[0].mxu0
        %v888 = vadd.f32 %v664, %v887
        %v889 = vpop.f32.mrb[0].mxu0
        %890 = vdwg.mxu0
        %891 = vst.msk [vmem:[%s226] sm:$0xff] %vm289, %v733
        %892 = vst.msk [vmem:[%s226 + $0x8] sm:$0xff] %vm289, %v738
        %893 = vst.msk [vmem:[%s226 + $0x10] sm:$0xff] %vm289, %v743
        %894 = vst.msk [vmem:[%s226 + $0x18] sm:$0xff] %vm289, %v748
        %895 = vst.msk [vmem:[%s226 + $0x20] sm:$0xff] %vm289, %v753
        %896 = vst.msk [vmem:[%s226 + $0x28] sm:$0xff] %vm289, %v758
        %897 = vst.msk [vmem:[%s226 + $0x30] sm:$0xff] %vm289, %v763
        %898 = vst.msk [vmem:[%s226 + $0x38] sm:$0xff] %vm289, %v768
        %899 = vst.msk [vmem:[%s226 + $0x40] sm:$0xff] %vm289, %v773
        %900 = vst.msk [vmem:[%s226 + $0x48] sm:$0xff] %vm289, %v778
        %901 = vst.msk [vmem:[%s226 + $0x50] sm:$0xff] %vm289, %v783
        %902 = vst.msk [vmem:[%s226 + $0x58] sm:$0xff] %vm289, %v788
        %903 = vst.msk [vmem:[%s226 + $0x60] sm:$0xff] %vm289, %v793
        %904 = vst.msk [vmem:[%s226 + $0x68] sm:$0xff] %vm289, %v798
        %905 = vst.msk [vmem:[%s226 + $0x70] sm:$0xff] %vm289, %v803
        %906 = vst.msk [vmem:[%s226 + $0x78] sm:$0xff] %vm289, %v808
        %907 = vst.msk [vmem:[%s226 + $0x80] sm:$0xff] %vm289, %v813
        %908 = vst.msk [vmem:[%s226 + $0x88] sm:$0xff] %vm289, %v818
        %909 = vst.msk [vmem:[%s226 + $0x90] sm:$0xff] %vm289, %v823
        %910 = vst.msk [vmem:[%s226 + $0x98] sm:$0xff] %vm289, %v828
        %911 = vst.msk [vmem:[%s226 + $0xa0] sm:$0xff] %vm289, %v833
        %912 = vst.msk [vmem:[%s226 + $0xa8] sm:$0xff] %vm289, %v838
        %913 = vst.msk [vmem:[%s226 + $0xb0] sm:$0xff] %vm289, %v843
        %914 = vst.msk [vmem:[%s226 + $0xb8] sm:$0xff] %vm289, %v848
        %915 = vst.msk [vmem:[%s226 + $0xc0] sm:$0xff] %vm289, %v853
        %916 = vst.msk [vmem:[%s226 + $0xc8] sm:$0xff] %vm289, %v858
        %917 = vst.msk [vmem:[%s226 + $0xd0] sm:$0xff] %vm289, %v863
        %918 = vst.msk [vmem:[%s226 + $0xd8] sm:$0xff] %vm289, %v868
        %919 = vst.msk [vmem:[%s226 + $0xe0] sm:$0xff] %vm289, %v873
        %920 = vst.msk [vmem:[%s226 + $0xe8] sm:$0xff] %vm289, %v878
        %921 = vst.msk [vmem:[%s226 + $0xf0] sm:$0xff] %vm289, %v883
        %922 = vst.msk [vmem:[%s226 + $0xf8] sm:$0xff] %vm289, %v888
        %s923 = sand.u32 %s134, 1
        %s924 = sand.u32 %s134, 1
        %s925 = smul.addr %s924, 256
        %s926 = scalar_lea.vmem [#allocation2], %s925
        // Predicated region
        $region41: #{tpu_custom_call.1} parent=39 // pred_check
          %p927 = pneg %p144
        $region42: #{tpu_custom_call.1} parent=39 // pred_check_branch
          %929 = sbr.rel (%p927) target = $region44
        $region43: #{tpu_custom_call.1} parent=39 // pred_region
          %s930 = smul.u32 32, %s16
          %s931 = ssub.s32 38, %s930
          %p932 = scmp.lt.s32.totalorder %s931, 32
          %s933 = scalar_select %p932, %s931, 32
          %s934 = smul.u32 128, %s933
          %p935 = scmp.ne.s32.totalorder 0, %s934
          %s936 = smul.addr %s930, 8
          %s937 = scalar_lea.vmem %s5, %s936
          // Predicated region
          $region45: #{tpu_custom_call.1} parent=43 // pred_check
            %p938 = pneg %p935
          $region46: #{tpu_custom_call.1} parent=43 // pred_check_branch
            %940 = sbr.rel (%p938) target = $region48
          $region47: #{tpu_custom_call.1} parent=43 // pred_region
            // Predicated region
            $region49: #{tpu_custom_call.1} parent=47 // pred_check
              _
            $region50: #{tpu_custom_call.1} parent=47 // pred_check_branch
              %942 = sbr.rel (0) target = $region52
            $region51: #{tpu_custom_call.1} parent=47 // pred_region
              // Predicated region
              $region71: #{tpu_custom_call.1} parent=51 // pred_check
                _
              $region72: #{tpu_custom_call.1} parent=51 // pred_check_branch
                %1053 = sbr.rel (0) target = $region74
              $region73: #{tpu_custom_call.1} parent=51 // pred_region
                %s1054 = sshrl.u32 %s933, 5
                // While loop
                $region75: #{tpu_custom_call.1} parent=73 // loop_pre_header
                  _
                $region76: #{tpu_custom_call.1} parent=73 // loop_header
                  %s1056 = sphi 0, %s1058
                  %p1057 = scmp.ge.s32.totalorder %s1056, %s1054
                  %s1061 = sphi 0, %s1130
                  %s1062 = sphi %s926, %s1133
                  %s1063 = sphi %s937, %s1134
                $region77: #{tpu_custom_call.1} parent=73 // loop_header_branch
                  %1060 = sbr.rel (%p1057) target = $region81
                $region78: #{tpu_custom_call.1} parent=73 // loop_body
                  %v1064 = vld [vmem:[%s1062] sm:$0xff]
                  %1065 = vst [vmem:[%s1063] sm:$0xff] %v1064
                  %v1066 = vld [vmem:[%s1062 + $0x8] sm:$0xff]
                  %1067 = vst [vmem:[%s1063 + $0x8] sm:$0xff] %v1066
                  %v1068 = vld [vmem:[%s1062 + $0x10] sm:$0xff]
                  %1069 = vst [vmem:[%s1063 + $0x10] sm:$0xff] %v1068
                  %v1070 = vld [vmem:[%s1062 + $0x18] sm:$0xff]
                  %1071 = vst [vmem:[%s1063 + $0x18] sm:$0xff] %v1070
                  %v1072 = vld [vmem:[%s1062 + $0x20] sm:$0xff]
                  %1073 = vst [vmem:[%s1063 + $0x20] sm:$0xff] %v1072
                  %v1074 = vld [vmem:[%s1062 + $0x28] sm:$0xff]
                  %1075 = vst [vmem:[%s1063 + $0x28] sm:$0xff] %v1074
                  %v1076 = vld [vmem:[%s1062 + $0x30] sm:$0xff]
                  %1077 = vst [vmem:[%s1063 + $0x30] sm:$0xff] %v1076
                  %v1078 = vld [vmem:[%s1062 + $0x38] sm:$0xff]
                  %1079 = vst [vmem:[%s1063 + $0x38] sm:$0xff] %v1078
                  %v1080 = vld [vmem:[%s1062 + $0x40] sm:$0xff]
                  %1081 = vst [vmem:[%s1063 + $0x40] sm:$0xff] %v1080
                  %v1082 = vld [vmem:[%s1062 + $0x48] sm:$0xff]
                  %1083 = vst [vmem:[%s1063 + $0x48] sm:$0xff] %v1082
                  %v1084 = vld [vmem:[%s1062 + $0x50] sm:$0xff]
                  %1085 = vst [vmem:[%s1063 + $0x50] sm:$0xff] %v1084
                  %v1086 = vld [vmem:[%s1062 + $0x58] sm:$0xff]
                  %1087 = vst [vmem:[%s1063 + $0x58] sm:$0xff] %v1086
                  %v1088 = vld [vmem:[%s1062 + $0x60] sm:$0xff]
                  %1089 = vst [vmem:[%s1063 + $0x60] sm:$0xff] %v1088
                  %v1090 = vld [vmem:[%s1062 + $0x68] sm:$0xff]
                  %1091 = vst [vmem:[%s1063 + $0x68] sm:$0xff] %v1090
                  %v1092 = vld [vmem:[%s1062 + $0x70] sm:$0xff]
                  %1093 = vst [vmem:[%s1063 + $0x70] sm:$0xff] %v1092
                  %v1094 = vld [vmem:[%s1062 + $0x78] sm:$0xff]
                  %1095 = vst [vmem:[%s1063 + $0x78] sm:$0xff] %v1094
                  %v1096 = vld [vmem:[%s1062 + $0x80] sm:$0xff]
                  %1097 = vst [vmem:[%s1063 + $0x80] sm:$0xff] %v1096
                  %v1098 = vld [vmem:[%s1062 + $0x88] sm:$0xff]
                  %1099 = vst [vmem:[%s1063 + $0x88] sm:$0xff] %v1098
                  %v1100 = vld [vmem:[%s1062 + $0x90] sm:$0xff]
                  %1101 = vst [vmem:[%s1063 + $0x90] sm:$0xff] %v1100
                  %v1102 = vld [vmem:[%s1062 + $0x98] sm:$0xff]
                  %1103 = vst [vmem:[%s1063 + $0x98] sm:$0xff] %v1102
                  %v1104 = vld [vmem:[%s1062 + $0xa0] sm:$0xff]
                  %1105 = vst [vmem:[%s1063 + $0xa0] sm:$0xff] %v1104
                  %v1106 = vld [vmem:[%s1062 + $0xa8] sm:$0xff]
                  %1107 = vst [vmem:[%s1063 + $0xa8] sm:$0xff] %v1106
                  %v1108 = vld [vmem:[%s1062 + $0xb0] sm:$0xff]
                  %1109 = vst [vmem:[%s1063 + $0xb0] sm:$0xff] %v1108
                  %v1110 = vld [vmem:[%s1062 + $0xb8] sm:$0xff]
                  %1111 = vst [vmem:[%s1063 + $0xb8] sm:$0xff] %v1110
                  %v1112 = vld [vmem:[%s1062 + $0xc0] sm:$0xff]
                  %1113 = vst [vmem:[%s1063 + $0xc0] sm:$0xff] %v1112
                  %v1114 = vld [vmem:[%s1062 + $0xc8] sm:$0xff]
                  %1115 = vst [vmem:[%s1063 + $0xc8] sm:$0xff] %v1114
                  %v1116 = vld [vmem:[%s1062 + $0xd0] sm:$0xff]
                  %1117 = vst [vmem:[%s1063 + $0xd0] sm:$0xff] %v1116
                  %v1118 = vld [vmem:[%s1062 + $0xd8] sm:$0xff]
                  %1119 = vst [vmem:[%s1063 + $0xd8] sm:$0xff] %v1118
                  %v1120 = vld [vmem:[%s1062 + $0xe0] sm:$0xff]
                  %1121 = vst [vmem:[%s1063 + $0xe0] sm:$0xff] %v1120
                  %v1122 = vld [vmem:[%s1062 + $0xe8] sm:$0xff]
                  %1123 = vst [vmem:[%s1063 + $0xe8] sm:$0xff] %v1122
                  %v1124 = vld [vmem:[%s1062 + $0xf0] sm:$0xff]
                  %1125 = vst [vmem:[%s1063 + $0xf0] sm:$0xff] %v1124
                  %v1126 = vld [vmem:[%s1062 + $0xf8] sm:$0xff]
                  %1127 = vst [vmem:[%s1063 + $0xf8] sm:$0xff] %v1126
                  %s1128 = sadd.s32 1, %s1061
                  %p1129 = scmp.ge.s32.totalorder %s1128, %s1054
                  %s1130 = scalar_select %p1129, 0, %s1128
                  %s1131 = smul.u32 %s1130, 256
                  %s1132 = smul.u32 %s1130, 256
                  %s1133 = scalar_lea.vmem %s926, %s1131 [#allocation2]
                  %s1134 = scalar_lea.vmem %s937, %s1132
                $region79: #{tpu_custom_call.1} parent=73 // loop_footer
                  %s1058 = sadd.s32 %s1056, 1
                $region80: #{tpu_custom_call.1} parent=73 // loop_footer_branch
                  %1055 = sbr.rel target = $region76
                $region81: #{tpu_custom_call.1} parent=73 // loop_exit
                  _
                %s1135 = sshrl.u32 %s933, 5
                %s1136 = sand.u32 %s933, 31
                %s1137 = smul.u32 %s1135, 32
                %s1138 = smul.u32 8, %s1137
                %s1139 = scalar_lea.vmem %s926, %s1138 [#allocation2]
                %s1140 = smul.u32 8, %s1137
                %s1141 = scalar_lea.vmem %s937, %s1140
                // While loop
                $region82: #{tpu_custom_call.1} parent=73 // loop_pre_header
                  _
                $region83: #{tpu_custom_call.1} parent=73 // loop_header
                  %s1143 = sphi 0, %s1145
                  %p1144 = scmp.ge.s32.totalorder %s1143, %s1136
                  %s1148 = sphi 0, %s1155
                  %s1149 = sphi %s1139, %s1158
                  %s1150 = sphi %s1141, %s1159
                $region84: #{tpu_custom_call.1} parent=73 // loop_header_branch
                  %1147 = sbr.rel (%p1144) target = $region88
                $region85: #{tpu_custom_call.1} parent=73 // loop_body
                  %v1151 = vld [vmem:[%s1149] sm:$0xff]
                  %1152 = vst [vmem:[%s1150] sm:$0xff] %v1151
                  %s1153 = sadd.s32 1, %s1148
                  %p1154 = scmp.ge.s32.totalorder %s1153, %s1136
                  %s1155 = scalar_select %p1154, 0, %s1153
                  %s1156 = smul.u32 %s1155, 8
                  %s1157 = smul.u32 %s1155, 8
                  %s1158 = scalar_lea.vmem %s1139, %s1156 [#allocation2]
                  %s1159 = scalar_lea.vmem %s1141, %s1157
                $region86: #{tpu_custom_call.1} parent=73 // loop_footer
                  %s1145 = sadd.s32 %s1143, 1
                $region87: #{tpu_custom_call.1} parent=73 // loop_footer_branch
                  %1142 = sbr.rel target = $region83
                $region88: #{tpu_custom_call.1} parent=73 // loop_exit
                  _
              $region74: #{tpu_custom_call.1} parent=51 // pred_fallthru
                _
              // Predicated region
              $region89: #{tpu_custom_call.1} parent=51 // pred_check
                _
              $region90: #{tpu_custom_call.1} parent=51 // pred_check_branch
                %1161 = sbr.rel target = $region92
              $region91: #{tpu_custom_call.1} parent=51 // pred_region
                _
              $region92: #{tpu_custom_call.1} parent=51 // pred_fallthru
                _
            $region52: #{tpu_custom_call.1} parent=47 // pred_fallthru
              _
            // Predicated region
            $region53: #{tpu_custom_call.1} parent=47 // pred_check
              _
            $region54: #{tpu_custom_call.1} parent=47 // pred_check_branch
              %944 = sbr.rel target = $region56
            $region55: #{tpu_custom_call.1} parent=47 // pred_region
              %s946 = sshrl.u32 %s933, 5
              // While loop
              $region57: #{tpu_custom_call.1} parent=55 // loop_pre_header
                _
              $region58: #{tpu_custom_call.1} parent=55 // loop_header
                %s948 = sphi 0, %s950
                %p949 = scmp.ge.s32.totalorder %s948, %s946
                %s953 = sphi 0, %s1022
                %s954 = sphi %s926, %s1025
                %s955 = sphi %s937, %s1026
              $region59: #{tpu_custom_call.1} parent=55 // loop_header_branch
                %952 = sbr.rel (%p949) target = $region63
              $region60: #{tpu_custom_call.1} parent=55 // loop_body
                %v956 = vld [vmem:[%s954] sm:$0xff]
                %957 = vst [vmem:[%s955] sm:$0xff] %v956
                %v958 = vld [vmem:[%s954 + $0x8] sm:$0xff]
                %959 = vst [vmem:[%s955 + $0x8] sm:$0xff] %v958
                %v960 = vld [vmem:[%s954 + $0x10] sm:$0xff]
                %961 = vst [vmem:[%s955 + $0x10] sm:$0xff] %v960
                %v962 = vld [vmem:[%s954 + $0x18] sm:$0xff]
                %963 = vst [vmem:[%s955 + $0x18] sm:$0xff] %v962
                %v964 = vld [vmem:[%s954 + $0x20] sm:$0xff]
                %965 = vst [vmem:[%s955 + $0x20] sm:$0xff] %v964
                %v966 = vld [vmem:[%s954 + $0x28] sm:$0xff]
                %967 = vst [vmem:[%s955 + $0x28] sm:$0xff] %v966
                %v968 = vld [vmem:[%s954 + $0x30] sm:$0xff]
                %969 = vst [vmem:[%s955 + $0x30] sm:$0xff] %v968
                %v970 = vld [vmem:[%s954 + $0x38] sm:$0xff]
                %971 = vst [vmem:[%s955 + $0x38] sm:$0xff] %v970
                %v972 = vld [vmem:[%s954 + $0x40] sm:$0xff]
                %973 = vst [vmem:[%s955 + $0x40] sm:$0xff] %v972
                %v974 = vld [vmem:[%s954 + $0x48] sm:$0xff]
                %975 = vst [vmem:[%s955 + $0x48] sm:$0xff] %v974
                %v976 = vld [vmem:[%s954 + $0x50] sm:$0xff]
                %977 = vst [vmem:[%s955 + $0x50] sm:$0xff] %v976
                %v978 = vld [vmem:[%s954 + $0x58] sm:$0xff]
                %979 = vst [vmem:[%s955 + $0x58] sm:$0xff] %v978
                %v980 = vld [vmem:[%s954 + $0x60] sm:$0xff]
                %981 = vst [vmem:[%s955 + $0x60] sm:$0xff] %v980
                %v982 = vld [vmem:[%s954 + $0x68] sm:$0xff]
                %983 = vst [vmem:[%s955 + $0x68] sm:$0xff] %v982
                %v984 = vld [vmem:[%s954 + $0x70] sm:$0xff]
                %985 = vst [vmem:[%s955 + $0x70] sm:$0xff] %v984
                %v986 = vld [vmem:[%s954 + $0x78] sm:$0xff]
                %987 = vst [vmem:[%s955 + $0x78] sm:$0xff] %v986
                %v988 = vld [vmem:[%s954 + $0x80] sm:$0xff]
                %989 = vst [vmem:[%s955 + $0x80] sm:$0xff] %v988
                %v990 = vld [vmem:[%s954 + $0x88] sm:$0xff]
                %991 = vst [vmem:[%s955 + $0x88] sm:$0xff] %v990
                %v992 = vld [vmem:[%s954 + $0x90] sm:$0xff]
                %993 = vst [vmem:[%s955 + $0x90] sm:$0xff] %v992
                %v994 = vld [vmem:[%s954 + $0x98] sm:$0xff]
                %995 = vst [vmem:[%s955 + $0x98] sm:$0xff] %v994
                %v996 = vld [vmem:[%s954 + $0xa0] sm:$0xff]
                %997 = vst [vmem:[%s955 + $0xa0] sm:$0xff] %v996
                %v998 = vld [vmem:[%s954 + $0xa8] sm:$0xff]
                %999 = vst [vmem:[%s955 + $0xa8] sm:$0xff] %v998
                %v1000 = vld [vmem:[%s954 + $0xb0] sm:$0xff]
                %1001 = vst [vmem:[%s955 + $0xb0] sm:$0xff] %v1000
                %v1002 = vld [vmem:[%s954 + $0xb8] sm:$0xff]
                %1003 = vst [vmem:[%s955 + $0xb8] sm:$0xff] %v1002
                %v1004 = vld [vmem:[%s954 + $0xc0] sm:$0xff]
                %1005 = vst [vmem:[%s955 + $0xc0] sm:$0xff] %v1004
                %v1006 = vld [vmem:[%s954 + $0xc8] sm:$0xff]
                %1007 = vst [vmem:[%s955 + $0xc8] sm:$0xff] %v1006
                %v1008 = vld [vmem:[%s954 + $0xd0] sm:$0xff]
                %1009 = vst [vmem:[%s955 + $0xd0] sm:$0xff] %v1008
                %v1010 = vld [vmem:[%s954 + $0xd8] sm:$0xff]
                %1011 = vst [vmem:[%s955 + $0xd8] sm:$0xff] %v1010
                %v1012 = vld [vmem:[%s954 + $0xe0] sm:$0xff]
                %1013 = vst [vmem:[%s955 + $0xe0] sm:$0xff] %v1012
                %v1014 = vld [vmem:[%s954 + $0xe8] sm:$0xff]
                %1015 = vst [vmem:[%s955 + $0xe8] sm:$0xff] %v1014
                %v1016 = vld [vmem:[%s954 + $0xf0] sm:$0xff]
                %1017 = vst [vmem:[%s955 + $0xf0] sm:$0xff] %v1016
                %v1018 = vld [vmem:[%s954 + $0xf8] sm:$0xff]
                %1019 = vst [vmem:[%s955 + $0xf8] sm:$0xff] %v1018
                %s1020 = sadd.s32 1, %s953
                %p1021 = scmp.ge.s32.totalorder %s1020, %s946
                %s1022 = scalar_select %p1021, 0, %s1020
                %s1023 = smul.u32 %s1022, 256
                %s1024 = smul.u32 %s1022, 256
                %s1025 = scalar_lea.vmem %s926, %s1023 [#allocation2]
                %s1026 = scalar_lea.vmem %s937, %s1024
              $region61: #{tpu_custom_call.1} parent=55 // loop_footer
                %s950 = sadd.s32 %s948, 1
              $region62: #{tpu_custom_call.1} parent=55 // loop_footer_branch
                %947 = sbr.rel target = $region58
              $region63: #{tpu_custom_call.1} parent=55 // loop_exit
                _
              %s1027 = sshrl.u32 %s933, 5
              %s1028 = sand.u32 %s933, 31
              %s1029 = smul.u32 %s1027, 32
              %s1030 = smul.u32 8, %s1029
              %s1031 = scalar_lea.vmem %s926, %s1030 [#allocation2]
              %s1032 = smul.u32 8, %s1029
              %s1033 = scalar_lea.vmem %s937, %s1032
              // While loop
              $region64: #{tpu_custom_call.1} parent=55 // loop_pre_header
                _
              $region65: #{tpu_custom_call.1} parent=55 // loop_header
                %s1035 = sphi 0, %s1037
                %p1036 = scmp.ge.s32.totalorder %s1035, %s1028
                %s1040 = sphi 0, %s1047
                %s1041 = sphi %s1031, %s1050
                %s1042 = sphi %s1033, %s1051
              $region66: #{tpu_custom_call.1} parent=55 // loop_header_branch
                %1039 = sbr.rel (%p1036) target = $region70
              $region67: #{tpu_custom_call.1} parent=55 // loop_body
                %v1043 = vld [vmem:[%s1041] sm:$0xff]
                %1044 = vst [vmem:[%s1042] sm:$0xff] %v1043
                %s1045 = sadd.s32 1, %s1040
                %p1046 = scmp.ge.s32.totalorder %s1045, %s1028
                %s1047 = scalar_select %p1046, 0, %s1045
                %s1048 = smul.u32 %s1047, 8
                %s1049 = smul.u32 %s1047, 8
                %s1050 = scalar_lea.vmem %s1031, %s1048 [#allocation2]
                %s1051 = scalar_lea.vmem %s1033, %s1049
              $region68: #{tpu_custom_call.1} parent=55 // loop_footer
                %s1037 = sadd.s32 %s1035, 1
              $region69: #{tpu_custom_call.1} parent=55 // loop_footer_branch
                %1034 = sbr.rel target = $region65
              $region70: #{tpu_custom_call.1} parent=55 // loop_exit
                _
            $region56: #{tpu_custom_call.1} parent=47 // pred_fallthru
              _
          $region48: #{tpu_custom_call.1} parent=43 // pred_fallthru
            _
          %1162 = vnop
        $region44: #{tpu_custom_call.1} parent=39 // pred_fallthru
          _
      $region40: #{tpu_custom_call.1} parent=5 // pred_fallthru
        _
      %p1163 = scmp.le.s32.totalorder 2, %s11
      // Predicated region
      $region93: #{tpu_custom_call.1} parent=5 // pred_check
        %p1164 = pneg %p1163
      $region94: #{tpu_custom_call.1} parent=5 // pred_check_branch
        %1166 = sbr.rel (%p1164) target = $region96
      $region95: #{tpu_custom_call.1} parent=5 // pred_region
        %s1167 = ssub.s32 %s11, 2
        // Predicated region
        $region97: #{tpu_custom_call.1} parent=95 // pred_check
          %p1168 = pneg %p150
        $region98: #{tpu_custom_call.1} parent=95 // pred_check_branch
          %1170 = sbr.rel (%p1168) target = $region100
        $region99: #{tpu_custom_call.1} parent=95 // pred_region
          %s1171 = sand.u32 %s135, 1
          %s1172 = sand.u32 %s135, 1
          %s1173 = smul.addr %s1172, 256
          %s1174 = scalar_lea.vmem [#allocation2], %s1173
        $region100: #{tpu_custom_call.1} parent=95 // pred_fallthru
          _
      $region96: #{tpu_custom_call.1} parent=5 // pred_fallthru
        _
    $region6: #{tpu_custom_call.1} parent=1 // loop_footer
      %s15 = sadd.s32 1, %s11
    $region7: #{tpu_custom_call.1} parent=1 // loop_footer_branch
      %10 = sbr.rel target = $region3
    $region8: #{tpu_custom_call.1} parent=1 // loop_exit
      _

</llo_original>
